<compile_context>
chip_gen: v7x
topology: tpu7x:2x2x1
jax: 0.10.0
libtpu: 0.0.40
codegen_flags: <defaults>
</compile_context>

<pallas_src>
import functools

import jax
import jax.numpy as jnp
from jax.experimental import pallas as pl
from jax.experimental.pallas import tpu as pltpu


# ---------------------------------------------------------------------------
# helpers
# ---------------------------------------------------------------------------
def _round_up(x, m):
    return (x + m - 1) // m * m


def _tile_rows(M, tile_m):
    """Pick effective row tile (multiple of 8, <= tile_m) and padded row count."""
    tm = min(tile_m, _round_up(M, 8))
    tm = _round_up(tm, 8)
    Mp = _round_up(M, tm)
    return tm, Mp


# ---------------------------------------------------------------------------
# fused Linear (matmul + bias)
# ---------------------------------------------------------------------------
def _linear_kernel(x_ref, w_ref, b_ref, o_ref):
    x = x_ref[...]
    y = jnp.dot(x, w_ref[...], preferred_element_type=jnp.float32)
    y = y + b_ref[...]
    o_ref[...] = y.astype(o_ref.dtype)


def _linear(x2d, w, b, *, tile_m):
    M, din = x2d.shape
    dout = w.shape[1]
    tm, Mp = _tile_rows(M, tile_m)
    if Mp != M:
        x2d = jnp.pad(x2d, ((0, Mp - M), (0, 0)))
    itemsize = jnp.dtype(x2d.dtype).itemsize
    out = pl.pallas_call(
        _linear_kernel,
        out_shape=jax.ShapeDtypeStruct((Mp, dout), x2d.dtype),
        grid_spec=pltpu.PrefetchScalarGridSpec(
            num_scalar_prefetch=0,
            grid=(Mp // tm,),
            in_specs=[
                pl.BlockSpec((tm, din), lambda i: (i, 0)),
                pl.BlockSpec((din, dout), lambda i: (0, 0)),
                pl.BlockSpec((1, dout), lambda i: (0, 0)),
            ],
            out_specs=pl.BlockSpec((tm, dout), lambda i: (i, 0)),
        ),
        compiler_params=pltpu.CompilerParams(dimension_semantics=("parallel",)),
        cost_estimate=pl.CostEstimate(
            flops=2 * Mp * din * dout,
            transcendentals=0,
            bytes_accessed=int((Mp * din + din * dout + dout + Mp * dout) * itemsize),
        ),
    )(x2d, w, b.reshape(1, dout))
    return out[:M]


# ---------------------------------------------------------------------------
# scaled dot-product attention (one (batch, head) per grid step)
# ---------------------------------------------------------------------------
def _mha_kernel(q_ref, k_ref, v_ref, mask_ref, ctx_ref, attn_ref, *, scale):
    # q_ref: (1, Sq, dk), k_ref/v_ref: (1, Sk, dk/dv), mask_ref: (1, Sq, Sk)
    q = q_ref[...][0].astype(jnp.float32)
    k = k_ref[...][0].astype(jnp.float32)
    v = v_ref[...][0]
    mask = mask_ref[...][0]

    s = jnp.dot(q, k.T, preferred_element_type=jnp.float32) * scale
    s = jnp.where(mask == 0.0, -1e10, s)                 # masked_fill(mask == 0, -1e10)
    m = jnp.max(s, axis=-1, keepdims=True)
    p = jnp.exp(s - m)
    attn = p / jnp.sum(p, axis=-1, keepdims=True)        # softmax(dim=-1)
    # TODO(synk): training-mode dropout on `attn` would go here (identity at inference).
    ctx = jnp.dot(attn.astype(v.dtype), v, preferred_element_type=jnp.float32)

    ctx_ref[...] = ctx[None].astype(ctx_ref.dtype)
    attn_ref[...] = attn[None].astype(attn_ref.dtype)


def _attention(q4, k4, v4, mask4, scale):
    B, H, Sq, dk = q4.shape
    Sk = k4.shape[2]
    dv = v4.shape[3]
    BH = B * H

    qf = q4.reshape(BH, Sq, dk)
    kf = k4.reshape(BH, Sk, dk)
    vf = v4.reshape(BH, Sk, dv)
    mf = jnp.broadcast_to(mask4.astype(jnp.float32), (B, H, Sq, Sk)).reshape(BH, Sq, Sk)

    kernel = functools.partial(_mha_kernel, scale=scale)
    ctx, attn = pl.pallas_call(
        kernel,
        out_shape=(
            jax.ShapeDtypeStruct((BH, Sq, dv), q4.dtype),
            jax.ShapeDtypeStruct((BH, Sq, Sk), jnp.float32),
        ),
        grid_spec=pltpu.PrefetchScalarGridSpec(
            num_scalar_prefetch=0,
            grid=(BH,),
            in_specs=[
                pl.BlockSpec((1, Sq, dk), lambda i: (i, 0, 0)),
                pl.BlockSpec((1, Sk, dk), lambda i: (i, 0, 0)),
                pl.BlockSpec((1, Sk, dv), lambda i: (i, 0, 0)),
                pl.BlockSpec((1, Sq, Sk), lambda i: (i, 0, 0)),
            ],
            out_specs=[
                pl.BlockSpec((1, Sq, dv), lambda i: (i, 0, 0)),
                pl.BlockSpec((1, Sq, Sk), lambda i: (i, 0, 0)),
            ],
        ),
        compiler_params=pltpu.CompilerParams(dimension_semantics=("parallel",)),
    )(qf, kf, vf, mf)
    return ctx.reshape(B, H, Sq, dv), attn.reshape(B, H, Sq, Sk)


def _multi_head_attention(query, key, value, mask, wq, bq, wk, bk, wv, bv, wo, bo,
                          *, n_heads, tile_m):
    B, Sq, d_model = query.shape
    Sk = key.shape[1]
    assert d_model % n_heads == 0
    d_k = d_model // n_heads

    Q = _linear(query.reshape(B * Sq, d_model), wq, bq, tile_m=tile_m)
    K = _linear(key.reshape(B * Sk, d_model), wk, bk, tile_m=tile_m)
    V = _linear(value.reshape(B * Sk, d_model), wv, bv, tile_m=tile_m)

    Q = Q.reshape(B, Sq, n_heads, d_k).transpose(0, 2, 1, 3)
    K = K.reshape(B, Sk, n_heads, d_k).transpose(0, 2, 1, 3)
    V = V.reshape(B, Sk, n_heads, d_k).transpose(0, 2, 1, 3)

    ctx, attn = _attention(Q, K, V, mask, 1.0 / (float(d_k) ** 0.5))

    ctx = ctx.transpose(0, 2, 1, 3).reshape(B * Sq, d_model)
    out = _linear(ctx, wo, bo, tile_m=tile_m).reshape(B, Sq, d_model)
    return out, attn


# ---------------------------------------------------------------------------
# fused residual add + LayerNorm
# ---------------------------------------------------------------------------
def _add_layernorm_kernel(x_ref, y_ref, g_ref, b_ref, o_ref):
    z = x_ref[...].astype(jnp.float32) + y_ref[...].astype(jnp.float32)
    mean = jnp.mean(z, axis=-1, keepdims=True)
    zc = z - mean
    var = jnp.mean(zc * zc, axis=-1, keepdims=True)
    inv = jax.lax.rsqrt(var + 1e-5)                       # nn.LayerNorm default eps
    o_ref[...] = (zc * inv * g_ref[...] + b_ref[...]).astype(o_ref.dtype)


def _add_layer_norm(x3, y3, gamma, beta, *, tile_m):
    B, S, D = x3.shape
    M = B * S
    x2 = x3.reshape(M, D)
    y2 = y3.reshape(M, D)
    tm, Mp = _tile_rows(M, tile_m)
    if Mp != M:
        x2 = jnp.pad(x2, ((0, Mp - M), (0, 0)))
        y2 = jnp.pad(y2, ((0, Mp - M), (0, 0)))
    out = pl.pallas_call(
        _add_layernorm_kernel,
        out_shape=jax.ShapeDtypeStruct((Mp, D), x3.dtype),
        grid_spec=pltpu.PrefetchScalarGridSpec(
            num_scalar_prefetch=0,
            grid=(Mp // tm,),
            in_specs=[
                pl.BlockSpec((tm, D), lambda i: (i, 0)),
                pl.BlockSpec((tm, D), lambda i: (i, 0)),
                pl.BlockSpec((1, D), lambda i: (0, 0)),
                pl.BlockSpec((1, D), lambda i: (0, 0)),
            ],
            out_specs=pl.BlockSpec((tm, D), lambda i: (i, 0)),
        ),
        compiler_params=pltpu.CompilerParams(dimension_semantics=("parallel",)),
    )(x2, y2, gamma.reshape(1, D), beta.reshape(1, D))
    return out[:M].reshape(B, S, D)


# ---------------------------------------------------------------------------
# fused positionwise FFN
# ---------------------------------------------------------------------------
def _ffn_kernel(x_ref, w1_ref, b1_ref, w2_ref, b2_ref, o_ref):
    x = x_ref[...]
    h = jnp.dot(x, w1_ref[...], preferred_element_type=jnp.float32)
    h = jnp.maximum(h + b1_ref[...], 0.0)                 # relu
    # dropout(p) is identity at inference.
    y = jnp.dot(h.astype(w2_ref.dtype), w2_ref[...], preferred_element_type=jnp.float32)
    y = y + b2_ref[...]
    o_ref[...] = y.astype(o_ref.dtype)


def _positionwise_ffn(x3, w1, b1, w2, b2, *, tile_m):
    B, S, d_model = x3.shape
    d_ff = w1.shape[1]
    M = B * S
    tm, Mp = _tile_rows(M, tile_m)
    x2 = x3.reshape(M, d_model)
    if Mp != M:
        x2 = jnp.pad(x2, ((0, Mp - M), (0, 0)))

    act_bytes = jnp.dtype(x3.dtype).itemsize
    w_bytes = jnp.dtype(w1.dtype).itemsize
    weight_bytes = (d_model * d_ff + d_ff * d_model + d_ff + d_model) * w_bytes
    # resident weights (single-buffered) + double-buffered x/out row tiles + f32 hidden tile
    tile_bytes = 2 * (tm * d_model * act_bytes) * 2 + 2 * tm * d_ff * 4
    vmem_bytes = int(min(max(32 << 20, weight_bytes + tile_bytes + (2 << 20)), 128 << 20))

    out = pl.pallas_call(
        _ffn_kernel,
        out_shape=jax.ShapeDtypeStruct((Mp, d_model), x3.dtype),
        grid_spec=pltpu.PrefetchScalarGridSpec(
            num_scalar_prefetch=0,
            grid=(Mp // tm,),
            in_specs=[
                pl.BlockSpec((tm, d_model), lambda i: (i, 0)),   # x row tile
                pl.BlockSpec((d_model, d_ff), lambda i: (0, 0)),  # W1 (resident)
                pl.BlockSpec((1, d_ff), lambda i: (0, 0)),        # b1
                pl.BlockSpec((d_ff, d_model), lambda i: (0, 0)),  # W2 (resident)
                pl.BlockSpec((1, d_model), lambda i: (0, 0)),     # b2
            ],
            out_specs=pl.BlockSpec((tm, d_model), lambda i: (i, 0)),
        ),
        compiler_params=pltpu.CompilerParams(
            dimension_semantics=("parallel",),
            vmem_limit_bytes=vmem_bytes,
        ),
        cost_estimate=pl.CostEstimate(
            flops=2 * Mp * (d_model * d_ff + d_ff * d_model),
            transcendentals=0,
            bytes_accessed=int(2 * Mp * d_model * act_bytes + weight_bytes),
        ),
    )(x2, w1, b1.reshape(1, d_ff), w2, b2.reshape(1, d_model))
    return out[:M].reshape(B, S, d_model)


# ---------------------------------------------------------------------------
# full decoder layer
# ---------------------------------------------------------------------------
@functools.partial(jax.jit, static_argnames=("n_heads", "tile_m"))
def transformer_decoder_layer(trg, enc_src, trg_mask, src_mask, params, *,
                              n_heads, tile_m=256):
    p = params
    # --- masked self-attention + add & norm ---
    sa, _ = _multi_head_attention(
        trg, trg, trg, trg_mask,
        p["sa_wq"], p["sa_bq"], p["sa_wk"], p["sa_bk"],
        p["sa_wv"], p["sa_bv"], p["sa_wo"], p["sa_bo"],
        n_heads=n_heads, tile_m=tile_m)
    x1 = _add_layer_norm(trg, sa, p["ln1_g"], p["ln1_b"], tile_m=tile_m)

    # --- encoder-decoder attention + add & norm ---
    ca, attention = _multi_head_attention(
        x1, enc_src, enc_src, src_mask,
        p["ca_wq"], p["ca_bq"], p["ca_wk"], p["ca_bk"],
        p["ca_wv"], p["ca_bv"], p["ca_wo"], p["ca_bo"],
        n_heads=n_heads, tile_m=tile_m)
    x2 = _add_layer_norm(x1, ca, p["ln2_g"], p["ln2_b"], tile_m=tile_m)

    # --- positionwise FFN + add & norm ---
    ff = _positionwise_ffn(x2, p["ff_w1"], p["ff_b1"], p["ff_w2"], p["ff_b2"],
                           tile_m=tile_m)
    out = _add_layer_norm(x2, ff, p["ln3_g"], p["ln3_b"], tile_m=tile_m)
    return out, attention


# ---------------------------------------------------------------------------
# pure-JAX reference (mirrors the PyTorch module in eval mode)
# ---------------------------------------------------------------------------
def _ref_mha(query, key, value, mask, wq, bq, wk, bk, wv, bv, wo, bo, n_heads):
    B, Sq, d_model = query.shape
    d_k = d_model // n_heads
    Q = (query @ wq + bq).reshape(B, -1, n_heads, d_k).transpose(0, 2, 1, 3)
    K = (key @ wk + bk).reshape(B, -1, n_heads, d_k).transpose(0, 2, 1, 3)
    V = (value @ wv + bv).reshape(B, -1, n_heads, d_k).transpose(0, 2, 1, 3)
    sim = jnp.einsum("bhqd,bhkd->bhqk", Q, K) / jnp.sqrt(jnp.float32(d_k))
    sim = jnp.where(mask == 0, -1e10, sim)
    attn = jax.nn.softmax(sim, axis=-1)
    x = jnp.einsum("bhqk,bhkd->bhqd", attn, V)
    x = x.transpose(0, 2, 1, 3).reshape(B, -1, d_model)
    return x @ wo + bo, attn


def _ref_layer_norm(x, g, b, eps=1e-5):
    mean = jnp.mean(x, axis=-1, keepdims=True)
    var = jnp.mean((x - mean) ** 2, axis=-1, keepdims=True)
    return (x - mean) / jnp.sqrt(var + eps) * g + b


def _ref_decoder_layer(trg, enc_src, trg_mask, src_mask, p, n_heads):
    sa, _ = _ref_mha(trg, trg, trg, trg_mask,
                     p["sa_wq"], p["sa_bq"], p["sa_wk"], p["sa_bk"],
                     p["sa_wv"], p["sa_bv"], p["sa_wo"], p["sa_bo"], n_heads)
    x1 = _ref_layer_norm(trg + sa, p["ln1_g"], p["ln1_b"])
    ca, attn = _ref_mha(x1, enc_src, enc_src, src_mask,
                        p["ca_wq"], p["ca_bq"], p["ca_wk"], p["ca_bk"],
                        p["ca_wv"], p["ca_bv"], p["ca_wo"], p["ca_bo"], n_heads)
    x2 = _ref_layer_norm(x1 + ca, p["ln2_g"], p["ln2_b"])
    ff = jnp.maximum(x2 @ p["ff_w1"] + p["ff_b1"], 0.0) @ p["ff_w2"] + p["ff_b2"]
    out = _ref_layer_norm(x2 + ff, p["ln3_g"], p["ln3_b"])
    return out, attn


# ---------------------------------------------------------------------------
# main
# ---------------------------------------------------------------------------
if __name__ == "__main__":
    batch, trg_seq, src_seq = 2, 8, 16
    d_model, n_heads, d_ff = 32, 4, 64
    d_k = d_model // n_heads
    dropout_ratio = 0.1   # identity at inference

    key = jax.random.PRNGKey(0)
    keys = jax.random.split(key, 32)
    ki = iter(range(32))

    def uniform(k, shape, fan_in):
        lim = 1.0 / (float(fan_in) ** 0.5)
        return jax.random.uniform(k, shape, minval=-lim, maxval=lim, dtype=jnp.float32)

    def make_attn_params(prefix):
        p = {}
        p[prefix + "wq"] = uniform(keys[next(ki)], (d_model, d_model), d_model)
        p[prefix + "bq"] = uniform(keys[next(ki)], (d_model,), d_model)
        p[prefix + "wk"] = uniform(keys[next(ki)], (d_model, d_model), d_model)
        p[prefix + "bk"] = uniform(keys[next(ki)], (d_model,), d_model)
        p[prefix + "wv"] = uniform(keys[next(ki)], (d_model, d_model), d_model)
        p[prefix + "bv"] = uniform(keys[next(ki)], (d_model,), d_model)
        p[prefix + "wo"] = uniform(keys[next(ki)], (d_model, d_model), d_model)
        p[prefix + "bo"] = uniform(keys[next(ki)], (d_model,), d_model)
        return p

    params = {}
    params.update(make_attn_params("sa_"))
    params.update(make_attn_params("ca_"))
    params["ff_w1"] = uniform(keys[next(ki)], (d_model, d_ff), d_model)
    params["ff_b1"] = uniform(keys[next(ki)], (d_ff,), d_model)
    params["ff_w2"] = uniform(keys[next(ki)], (d_ff, d_model), d_ff)
    params["ff_b2"] = uniform(keys[next(ki)], (d_model,), d_ff)
    for n, kg, kb in (("ln1", next(ki), next(ki)),
                      ("ln2", next(ki), next(ki)),
                      ("ln3", next(ki), next(ki))):
        params[n + "_g"] = 1.0 + 0.1 * jax.random.normal(keys[kg], (d_model,), dtype=jnp.float32)
        params[n + "_b"] = 0.1 * jax.random.normal(keys[kb], (d_model,), dtype=jnp.float32)

    trg = jax.random.normal(keys[next(ki)], (batch, trg_seq, d_model), dtype=jnp.float32)
    enc_src = jax.random.normal(keys[next(ki)], (batch, src_seq, d_model), dtype=jnp.float32)

    # causal target mask (B, 1, Sq, Sq); source padding mask (B, 1, 1, Sk)
    causal = jnp.tril(jnp.ones((trg_seq, trg_seq), dtype=jnp.float32))
    trg_mask = jnp.broadcast_to(causal, (batch, 1, trg_seq, trg_seq))
    src_valid = jnp.arange(src_seq) < jnp.array([[src_seq], [src_seq - 3]])
    src_mask = src_valid.astype(jnp.float32).reshape(batch, 1, 1, src_seq)

    out, attention = transformer_decoder_layer(
        trg, enc_src, trg_mask, src_mask, params, n_heads=n_heads, tile_m=256)
    out = jax.block_until_ready(out)
    attention = jax.block_until_ready(attention)

    ref_out, ref_attn = _ref_decoder_layer(trg, enc_src, trg_mask, src_mask, params, n_heads)

    assert out.shape == (batch, trg_seq, d_model)
    assert attention.shape == (batch, n_heads, trg_seq, src_seq)
    assert jnp.allclose(out, ref_out, atol=5e-4, rtol=5e-4), "output mismatch vs JAX reference"
    assert jnp.allclose(attention, ref_attn, atol=5e-4, rtol=5e-4), "attention mismatch vs JAX reference"

    print("KERNEL_OK")
</pallas_src>

<mosaic_0001>
module attributes {stable_mosaic.version = 11 : i64} {
  func.func @_linear_kernel(%arg0: i32, %arg1: memref<16x32xf32, #tpu.memory_space<vmem>>, %arg2: memref<32x32xf32, #tpu.memory_space<vmem>>, %arg3: memref<1x32xf32, #tpu.memory_space<vmem>>, %arg4: memref<16x32xf32, #tpu.memory_space<vmem>>) attributes {dimension_semantics = [#tpu.dimension_semantics<parallel>], iteration_bounds = array<i64: 1>, scalar_prefetch = 0 : i64, scratch_operands = 0 : i64, tpu.core_type = #tpu.core_type<tc>, window_params = [{transform_indices = @transform_0, window_bounds = array<i64: 16, 32>}, {pipeline_mode = #tpu.pipeline_mode<synchronous>, transform_indices = @transform_1, window_bounds = array<i64: 32, 32>}, {pipeline_mode = #tpu.pipeline_mode<synchronous>, transform_indices = @transform_2, window_bounds = array<i64: 1, 32>}, {transform_indices = @transform_3, window_bounds = array<i64: 16, 32>}]} {
    %c0 = arith.constant 0 : index
    %c0_0 = arith.constant 0 : index
    %0 = vector.load %arg1[%c0, %c0_0] : memref<16x32xf32, #tpu.memory_space<vmem>>, vector<16x32xf32>
    %c0_1 = arith.constant 0 : index
    %c0_2 = arith.constant 0 : index
    %1 = vector.load %arg2[%c0_1, %c0_2] : memref<32x32xf32, #tpu.memory_space<vmem>>, vector<32x32xf32>
    %cst = arith.constant dense<0.000000e+00> : vector<16x32xf32>
    %2 = tpu.matmul %0, %1, %cst {dimension_numbers = #tpu.dot_dimension_numbers<[1], [0], [0], [1], [0, 0, 1, 1], [], []>} : vector<16x32xf32>, vector<32x32xf32>, vector<16x32xf32> -> vector<16x32xf32>
    %c0_3 = arith.constant 0 : index
    %c0_4 = arith.constant 0 : index
    %3 = vector.load %arg3[%c0_3, %c0_4] : memref<1x32xf32, #tpu.memory_space<vmem>>, vector<1x32xf32>
    %4 = vector.broadcast %3 : vector<1x32xf32> to vector<16x32xf32>
    %5 = arith.addf %2, %4 : vector<16x32xf32>
    %c0_5 = arith.constant 0 : index
    %c0_6 = arith.constant 0 : index
    %6 = vector.load %arg4[%c0_5, %c0_6] : memref<16x32xf32, #tpu.memory_space<vmem>>, vector<16x32xf32>
    tpu.vector_store %arg4[%c0_5, %c0_6], %5 {strides = array<i32>} : memref<16x32xf32, #tpu.memory_space<vmem>>, vector<16x32xf32>,
    return
  }
  func.func @transform_0(%arg0: i32) -> (i32, i32) {
    %c0_i32 = arith.constant 0 : i32
    %c0_i32_0 = arith.constant 0 : i32
    return %arg0, %c0_i32 : i32, i32
  }
  func.func @transform_1(%arg0: i32) -> (i32, i32) {
    %c0_i32 = arith.constant 0 : i32
    %c0_i32_0 = arith.constant 0 : i32
    %c0_i32_1 = arith.constant 0 : i32
    return %c0_i32, %c0_i32_0 : i32, i32
  }
  func.func @transform_2(%arg0: i32) -> (i32, i32) {
    %c0_i32 = arith.constant 0 : i32
    %c0_i32_0 = arith.constant 0 : i32
    %c0_i32_1 = arith.constant 0 : i32
    return %c0_i32, %c0_i32_0 : i32, i32
  }
  func.func @transform_3(%arg0: i32) -> (i32, i32) {
    %c0_i32 = arith.constant 0 : i32
    %c0_i32_0 = arith.constant 0 : i32
    return %arg0, %c0_i32 : i32, i32
  }
}

module attributes {stable_mosaic.version = 11 : i64} {
  func.func @_mha_kernel(%arg0: i32, %arg1: memref<1x8x8xf32, #tpu.memory_space<vmem>>, %arg2: memref<1x8x8xf32, #tpu.memory_space<vmem>>, %arg3: memref<1x8x8xf32, #tpu.memory_space<vmem>>, %arg4: memref<1x8x8xf32, #tpu.memory_space<vmem>>, %arg5: memref<1x8x8xf32, #tpu.memory_space<vmem>>, %arg6: memref<1x8x8xf32, #tpu.memory_space<vmem>>) attributes {dimension_semantics = [#tpu.dimension_semantics<parallel>], iteration_bounds = array<i64: 8>, scalar_prefetch = 0 : i64, scratch_operands = 0 : i64, tpu.core_type = #tpu.core_type<tc>, window_params = [{transform_indices = @transform_0, window_bounds = array<i64: 1, 8, 8>}, {transform_indices = @transform_1, window_bounds = array<i64: 1, 8, 8>}, {transform_indices = @transform_2, window_bounds = array<i64: 1, 8, 8>}, {transform_indices = @transform_3, window_bounds = array<i64: 1, 8, 8>}, {transform_indices = @transform_4, window_bounds = array<i64: 1, 8, 8>}, {transform_indices = @transform_5, window_bounds = array<i64: 1, 8, 8>}]} {
    %c0 = arith.constant 0 : index
    %c0_0 = arith.constant 0 : index
    %c0_1 = arith.constant 0 : index
    %0 = vector.load %arg1[%c0, %c0_0, %c0_1] : memref<1x8x8xf32, #tpu.memory_space<vmem>>, vector<1x8x8xf32>
    %1 = vector.shape_cast %0 : vector<1x8x8xf32> to vector<8x8xf32>
    %c0_2 = arith.constant 0 : index
    %c0_3 = arith.constant 0 : index
    %c0_4 = arith.constant 0 : index
    %2 = vector.load %arg2[%c0_2, %c0_3, %c0_4] : memref<1x8x8xf32, #tpu.memory_space<vmem>>, vector<1x8x8xf32>
    %3 = vector.shape_cast %2 : vector<1x8x8xf32> to vector<8x8xf32>
    %c0_5 = arith.constant 0 : index
    %c0_6 = arith.constant 0 : index
    %c0_7 = arith.constant 0 : index
    %4 = vector.load %arg3[%c0_5, %c0_6, %c0_7] : memref<1x8x8xf32, #tpu.memory_space<vmem>>, vector<1x8x8xf32>
    %5 = vector.shape_cast %4 : vector<1x8x8xf32> to vector<8x8xf32>
    %c0_8 = arith.constant 0 : index
    %c0_9 = arith.constant 0 : index
    %c0_10 = arith.constant 0 : index
    %6 = vector.load %arg4[%c0_8, %c0_9, %c0_10] : memref<1x8x8xf32, #tpu.memory_space<vmem>>, vector<1x8x8xf32>
    %7 = vector.shape_cast %6 : vector<1x8x8xf32> to vector<8x8xf32>
    %8 = tpu.transpose %3, [1, 0] : vector<8x8xf32> -> vector<8x8xf32>
    %cst = arith.constant dense<0.000000e+00> : vector<8x8xf32>
    %9 = tpu.matmul %1, %8, %cst {dimension_numbers = #tpu.dot_dimension_numbers<[1], [0], [0], [1], [0, 0, 1, 1], [], []>} : vector<8x8xf32>, vector<8x8xf32>, vector<8x8xf32> -> vector<8x8xf32>
    %cst_11 = arith.constant 0.353553385 : f32
    %10 = vector.broadcast %cst_11 : f32 to vector<8x8xf32>
    %11 = arith.mulf %9, %10 : vector<8x8xf32>
    %cst_12 = arith.constant 0.000000e+00 : f32
    %12 = vector.broadcast %cst_12 : f32 to vector<8x8xf32>
    %13 = arith.cmpf oeq, %7, %12 : vector<8x8xf32>
    %cst_13 = arith.constant -1.000000e+10 : f32
    %14 = vector.broadcast %cst_13 : f32 to vector<8x8xf32>
    %15 = arith.select %13, %14, %11 : vector<8x8xi1>, vector<8x8xf32>
    %cst_14 = arith.constant dense<0xFF800000> : vector<8xf32>
    %16 = vector.multi_reduction <maximumf>, %15, %cst_14 [1] : vector<8x8xf32> to vector<8xf32>
    %17 = vector.shape_cast %16 : vector<8xf32> to vector<8x1xf32>
    %18 = vector.broadcast %17 : vector<8x1xf32> to vector<8x8xf32>
    %19 = arith.subf %15, %18 : vector<8x8xf32>
    %20 = math.exp %19 : vector<8x8xf32>
    %cst_15 = arith.constant dense<0.000000e+00> : vector<8xf32>
    %21 = vector.multi_reduction <add>, %20, %cst_15 [1] : vector<8x8xf32> to vector<8xf32>
    %22 = vector.shape_cast %21 : vector<8xf32> to vector<8x1xf32>
    %23 = vector.broadcast %22 : vector<8x1xf32> to vector<8x8xf32>
    %24 = arith.divf %20, %23 : vector<8x8xf32>
    %cst_16 = arith.constant dense<0.000000e+00> : vector<8x8xf32>
    %25 = tpu.matmul %24, %5, %cst_16 {dimension_numbers = #tpu.dot_dimension_numbers<[1], [0], [0], [1], [0, 0, 1, 1], [], []>} : vector<8x8xf32>, vector<8x8xf32>, vector<8x8xf32> -> vector<8x8xf32>
    %26 = vector.shape_cast %25 : vector<8x8xf32> to vector<1x8x8xf32>
    %c0_17 = arith.constant 0 : index
    %c0_18 = arith.constant 0 : index
    %c0_19 = arith.constant 0 : index
    %27 = vector.load %arg5[%c0_17, %c0_18, %c0_19] : memref<1x8x8xf32, #tpu.memory_space<vmem>>, vector<1x8x8xf32>
    tpu.vector_store %arg5[%c0_17, %c0_18, %c0_19], %26 {strides = array<i32>} : memref<1x8x8xf32, #tpu.memory_space<vmem>>, vector<1x8x8xf32>,
    %28 = vector.shape_cast %24 : vector<8x8xf32> to vector<1x8x8xf32>
    %c0_20 = arith.constant 0 : index
    %c0_21 = arith.constant 0 : index
    %c0_22 = arith.constant 0 : index
    %29 = vector.load %arg6[%c0_20, %c0_21, %c0_22] : memref<1x8x8xf32, #tpu.memory_space<vmem>>, vector<1x8x8xf32>
    tpu.vector_store %arg6[%c0_20, %c0_21, %c0_22], %28 {strides = array<i32>} : memref<1x8x8xf32, #tpu.memory_space<vmem>>, vector<1x8x8xf32>,
    return
  }
  func.func @transform_0(%arg0: i32) -> (i32, i32, i32) {
    %c0_i32 = arith.constant 0 : i32
    %c0_i32_0 = arith.constant 0 : i32
    %c0_i32_1 = arith.constant 0 : i32
    return %arg0, %c0_i32, %c0_i32_0 : i32, i32, i32
  }
  func.func @transform_1(%arg0: i32) -> (i32, i32, i32) {
    %c0_i32 = arith.constant 0 : i32
    %c0_i32_0 = arith.constant 0 : i32
    %c0_i32_1 = arith.constant 0 : i32
    return %arg0, %c0_i32, %c0_i32_0 : i32, i32, i32
  }
  func.func @transform_2(%arg0: i32) -> (i32, i32, i32) {
    %c0_i32 = arith.constant 0 : i32
    %c0_i32_0 = arith.constant 0 : i32
    %c0_i32_1 = arith.constant 0 : i32
    return %arg0, %c0_i32, %c0_i32_0 : i32, i32, i32
  }
  func.func @transform_3(%arg0: i32) -> (i32, i32, i32) {
    %c0_i32 = arith.constant 0 : i32
    %c0_i32_0 = arith.constant 0 : i32
    %c0_i32_1 = arith.constant 0 : i32
    return %arg0, %c0_i32, %c0_i32_0 : i32, i32, i32
  }
  func.func @transform_4(%arg0: i32) -> (i32, i32, i32) {
    %c0_i32 = arith.constant 0 : i32
    %c0_i32_0 = arith.constant 0 : i32
    %c0_i32_1 = arith.constant 0 : i32
    return %arg0, %c0_i32, %c0_i32_0 : i32, i32, i32
  }
  func.func @transform_5(%arg0: i32) -> (i32, i32, i32) {
    %c0_i32 = arith.constant 0 : i32
    %c0_i32_0 = arith.constant 0 : i32
    %c0_i32_1 = arith.constant 0 : i32
    return %arg0, %c0_i32, %c0_i32_0 : i32, i32, i32
  }
}

module attributes {stable_mosaic.version = 11 : i64} {
  func.func @_add_layernorm_kernel(%arg0: i32, %arg1: memref<16x32xf32, #tpu.memory_space<vmem>>, %arg2: memref<16x32xf32, #tpu.memory_space<vmem>>, %arg3: memref<1x32xf32, #tpu.memory_space<vmem>>, %arg4: memref<1x32xf32, #tpu.memory_space<vmem>>, %arg5: memref<16x32xf32, #tpu.memory_space<vmem>>) attributes {dimension_semantics = [#tpu.dimension_semantics<parallel>], iteration_bounds = array<i64: 1>, scalar_prefetch = 0 : i64, scratch_operands = 0 : i64, tpu.core_type = #tpu.core_type<tc>, window_params = [{transform_indices = @transform_0, window_bounds = array<i64: 16, 32>}, {transform_indices = @transform_1, window_bounds = array<i64: 16, 32>}, {pipeline_mode = #tpu.pipeline_mode<synchronous>, transform_indices = @transform_2, window_bounds = array<i64: 1, 32>}, {pipeline_mode = #tpu.pipeline_mode<synchronous>, transform_indices = @transform_3, window_bounds = array<i64: 1, 32>}, {transform_indices = @transform_4, window_bounds = array<i64: 16, 32>}]} {
    %c0 = arith.constant 0 : index
    %c0_0 = arith.constant 0 : index
    %0 = vector.load %arg1[%c0, %c0_0] : memref<16x32xf32, #tpu.memory_space<vmem>>, vector<16x32xf32>
    %c0_1 = arith.constant 0 : index
    %c0_2 = arith.constant 0 : index
    %1 = vector.load %arg2[%c0_1, %c0_2] : memref<16x32xf32, #tpu.memory_space<vmem>>, vector<16x32xf32>
    %2 = arith.addf %0, %1 : vector<16x32xf32>
    %cst = arith.constant dense<0.000000e+00> : vector<16xf32>
    %3 = vector.multi_reduction <add>, %2, %cst [1] : vector<16x32xf32> to vector<16xf32>
    %4 = vector.shape_cast %3 : vector<16xf32> to vector<16x1xf32>
    %cst_3 = arith.constant 3.200000e+01 : f32
    %5 = vector.broadcast %cst_3 : f32 to vector<16x1xf32>
    %6 = arith.divf %4, %5 : vector<16x1xf32>
    %7 = vector.broadcast %6 : vector<16x1xf32> to vector<16x32xf32>
    %8 = arith.subf %2, %7 : vector<16x32xf32>
    %9 = arith.mulf %8, %8 : vector<16x32xf32>
    %cst_4 = arith.constant dense<0.000000e+00> : vector<16xf32>
    %10 = vector.multi_reduction <add>, %9, %cst_4 [1] : vector<16x32xf32> to vector<16xf32>
    %11 = vector.shape_cast %10 : vector<16xf32> to vector<16x1xf32>
    %cst_5 = arith.constant 3.200000e+01 : f32
    %12 = vector.broadcast %cst_5 : f32 to vector<16x1xf32>
    %13 = arith.divf %11, %12 : vector<16x1xf32>
    %cst_6 = arith.constant 9.99999974E-6 : f32
    %14 = vector.broadcast %cst_6 : f32 to vector<16x1xf32>
    %15 = arith.addf %13, %14 : vector<16x1xf32>
    %16 = math.rsqrt %15 : vector<16x1xf32>
    %17 = vector.broadcast %16 : vector<16x1xf32> to vector<16x32xf32>
    %18 = arith.mulf %8, %17 : vector<16x32xf32>
    %c0_7 = arith.constant 0 : index
    %c0_8 = arith.constant 0 : index
    %19 = vector.load %arg3[%c0_7, %c0_8] : memref<1x32xf32, #tpu.memory_space<vmem>>, vector<1x32xf32>
    %20 = vector.broadcast %19 : vector<1x32xf32> to vector<16x32xf32>
    %21 = arith.mulf %18, %20 : vector<16x32xf32>
    %c0_9 = arith.constant 0 : index
    %c0_10 = arith.constant 0 : index
    %22 = vector.load %arg4[%c0_9, %c0_10] : memref<1x32xf32, #tpu.memory_space<vmem>>, vector<1x32xf32>
    %23 = vector.broadcast %22 : vector<1x32xf32> to vector<16x32xf32>
    %24 = arith.addf %21, %23 : vector<16x32xf32>
    %c0_11 = arith.constant 0 : index
    %c0_12 = arith.constant 0 : index
    %25 = vector.load %arg5[%c0_11, %c0_12] : memref<16x32xf32, #tpu.memory_space<vmem>>, vector<16x32xf32>
    tpu.vector_store %arg5[%c0_11, %c0_12], %24 {strides = array<i32>} : memref<16x32xf32, #tpu.memory_space<vmem>>, vector<16x32xf32>,
    return
  }
  func.func @transform_0(%arg0: i32) -> (i32, i32) {
    %c0_i32 = arith.constant 0 : i32
    %c0_i32_0 = arith.constant 0 : i32
    return %arg0, %c0_i32 : i32, i32
  }
  func.func @transform_1(%arg0: i32) -> (i32, i32) {
    %c0_i32 = arith.constant 0 : i32
    %c0_i32_0 = arith.constant 0 : i32
    return %arg0, %c0_i32 : i32, i32
  }
  func.func @transform_2(%arg0: i32) -> (i32, i32) {
    %c0_i32 = arith.constant 0 : i32
    %c0_i32_0 = arith.constant 0 : i32
    %c0_i32_1 = arith.constant 0 : i32
    return %c0_i32, %c0_i32_0 : i32, i32
  }
  func.func @transform_3(%arg0: i32) -> (i32, i32) {
    %c0_i32 = arith.constant 0 : i32
    %c0_i32_0 = arith.constant 0 : i32
    %c0_i32_1 = arith.constant 0 : i32
    return %c0_i32, %c0_i32_0 : i32, i32
  }
  func.func @transform_4(%arg0: i32) -> (i32, i32) {
    %c0_i32 = arith.constant 0 : i32
    %c0_i32_0 = arith.constant 0 : i32
    return %arg0, %c0_i32 : i32, i32
  }
}

module attributes {stable_mosaic.version = 11 : i64} {
  func.func @_linear_kernel(%arg0: i32, %arg1: memref<32x32xf32, #tpu.memory_space<vmem>>, %arg2: memref<32x32xf32, #tpu.memory_space<vmem>>, %arg3: memref<1x32xf32, #tpu.memory_space<vmem>>, %arg4: memref<32x32xf32, #tpu.memory_space<vmem>>) attributes {dimension_semantics = [#tpu.dimension_semantics<parallel>], iteration_bounds = array<i64: 1>, scalar_prefetch = 0 : i64, scratch_operands = 0 : i64, tpu.core_type = #tpu.core_type<tc>, window_params = [{transform_indices = @transform_0, window_bounds = array<i64: 32, 32>}, {pipeline_mode = #tpu.pipeline_mode<synchronous>, transform_indices = @transform_1, window_bounds = array<i64: 32, 32>}, {pipeline_mode = #tpu.pipeline_mode<synchronous>, transform_indices = @transform_2, window_bounds = array<i64: 1, 32>}, {transform_indices = @transform_3, window_bounds = array<i64: 32, 32>}]} {
    %c0 = arith.constant 0 : index
    %c0_0 = arith.constant 0 : index
    %0 = vector.load %arg1[%c0, %c0_0] : memref<32x32xf32, #tpu.memory_space<vmem>>, vector<32x32xf32>
    %c0_1 = arith.constant 0 : index
    %c0_2 = arith.constant 0 : index
    %1 = vector.load %arg2[%c0_1, %c0_2] : memref<32x32xf32, #tpu.memory_space<vmem>>, vector<32x32xf32>
    %cst = arith.constant dense<0.000000e+00> : vector<32x32xf32>
    %2 = tpu.matmul %0, %1, %cst {dimension_numbers = #tpu.dot_dimension_numbers<[1], [0], [0], [1], [0, 0, 1, 1], [], []>} : vector<32x32xf32>, vector<32x32xf32>, vector<32x32xf32> -> vector<32x32xf32>
    %c0_3 = arith.constant 0 : index
    %c0_4 = arith.constant 0 : index
    %3 = vector.load %arg3[%c0_3, %c0_4] : memref<1x32xf32, #tpu.memory_space<vmem>>, vector<1x32xf32>
    %4 = vector.broadcast %3 : vector<1x32xf32> to vector<32x32xf32>
    %5 = arith.addf %2, %4 : vector<32x32xf32>
    %c0_5 = arith.constant 0 : index
    %c0_6 = arith.constant 0 : index
    %6 = vector.load %arg4[%c0_5, %c0_6] : memref<32x32xf32, #tpu.memory_space<vmem>>, vector<32x32xf32>
    tpu.vector_store %arg4[%c0_5, %c0_6], %5 {strides = array<i32>} : memref<32x32xf32, #tpu.memory_space<vmem>>, vector<32x32xf32>,
    return
  }
  func.func @transform_0(%arg0: i32) -> (i32, i32) {
    %c0_i32 = arith.constant 0 : i32
    %c0_i32_0 = arith.constant 0 : i32
    return %arg0, %c0_i32 : i32, i32
  }
  func.func @transform_1(%arg0: i32) -> (i32, i32) {
    %c0_i32 = arith.constant 0 : i32
    %c0_i32_0 = arith.constant 0 : i32
    %c0_i32_1 = arith.constant 0 : i32
    return %c0_i32, %c0_i32_0 : i32, i32
  }
  func.func @transform_2(%arg0: i32) -> (i32, i32) {
    %c0_i32 = arith.constant 0 : i32
    %c0_i32_0 = arith.constant 0 : i32
    %c0_i32_1 = arith.constant 0 : i32
    return %c0_i32, %c0_i32_0 : i32, i32
  }
  func.func @transform_3(%arg0: i32) -> (i32, i32) {
    %c0_i32 = arith.constant 0 : i32
    %c0_i32_0 = arith.constant 0 : i32
    return %arg0, %c0_i32 : i32, i32
  }
}

module attributes {stable_mosaic.version = 11 : i64} {
  func.func @_add_layernorm_kernel(%arg0: i32, %arg1: memref<16x32xf32, #tpu.memory_space<vmem>>, %arg2: memref<16x32xf32, #tpu.memory_space<vmem>>, %arg3: memref<1x32xf32, #tpu.memory_space<vmem>>, %arg4: memref<1x32xf32, #tpu.memory_space<vmem>>, %arg5: memref<16x32xf32, #tpu.memory_space<vmem>>) attributes {dimension_semantics = [#tpu.dimension_semantics<parallel>], iteration_bounds = array<i64: 1>, scalar_prefetch = 0 : i64, scratch_operands = 0 : i64, tpu.core_type = #tpu.core_type<tc>, window_params = [{transform_indices = @transform_0, window_bounds = array<i64: 16, 32>}, {transform_indices = @transform_1, window_bounds = array<i64: 16, 32>}, {pipeline_mode = #tpu.pipeline_mode<synchronous>, transform_indices = @transform_2, window_bounds = array<i64: 1, 32>}, {pipeline_mode = #tpu.pipeline_mode<synchronous>, transform_indices = @transform_3, window_bounds = array<i64: 1, 32>}, {transform_indices = @transform_4, window_bounds = array<i64: 16, 32>}]} {
    %c0 = arith.constant 0 : index
    %c0_0 = arith.constant 0 : index
    %0 = vector.load %arg1[%c0, %c0_0] : memref<16x32xf32, #tpu.memory_space<vmem>>, vector<16x32xf32>
    %c0_1 = arith.constant 0 : index
    %c0_2 = arith.constant 0 : index
    %1 = vector.load %arg2[%c0_1, %c0_2] : memref<16x32xf32, #tpu.memory_space<vmem>>, vector<16x32xf32>
    %2 = arith.addf %0, %1 : vector<16x32xf32>
    %cst = arith.constant dense<0.000000e+00> : vector<16xf32>
    %3 = vector.multi_reduction <add>, %2, %cst [1] : vector<16x32xf32> to vector<16xf32>
    %4 = vector.shape_cast %3 : vector<16xf32> to vector<16x1xf32>
    %cst_3 = arith.constant 3.200000e+01 : f32
    %5 = vector.broadcast %cst_3 : f32 to vector<16x1xf32>
    %6 = arith.divf %4, %5 : vector<16x1xf32>
    %7 = vector.broadcast %6 : vector<16x1xf32> to vector<16x32xf32>
    %8 = arith.subf %2, %7 : vector<16x32xf32>
    %9 = arith.mulf %8, %8 : vector<16x32xf32>
    %cst_4 = arith.constant dense<0.000000e+00> : vector<16xf32>
    %10 = vector.multi_reduction <add>, %9, %cst_4 [1] : vector<16x32xf32> to vector<16xf32>
    %11 = vector.shape_cast %10 : vector<16xf32> to vector<16x1xf32>
    %cst_5 = arith.constant 3.200000e+01 : f32
    %12 = vector.broadcast %cst_5 : f32 to vector<16x1xf32>
    %13 = arith.divf %11, %12 : vector<16x1xf32>
    %cst_6 = arith.constant 9.99999974E-6 : f32
    %14 = vector.broadcast %cst_6 : f32 to vector<16x1xf32>
    %15 = arith.addf %13, %14 : vector<16x1xf32>
    %16 = math.rsqrt %15 : vector<16x1xf32>
    %17 = vector.broadcast %16 : vector<16x1xf32> to vector<16x32xf32>
    %18 = arith.mulf %8, %17 : vector<16x32xf32>
    %c0_7 = arith.constant 0 : index
    %c0_8 = arith.constant 0 : index
    %19 = vector.load %arg3[%c0_7, %c0_8] : memref<1x32xf32, #tpu.memory_space<vmem>>, vector<1x32xf32>
    %20 = vector.broadcast %19 : vector<1x32xf32> to vector<16x32xf32>
    %21 = arith.mulf %18, %20 : vector<16x32xf32>
    %c0_9 = arith.constant 0 : index
    %c0_10 = arith.constant 0 : index
    %22 = vector.load %arg4[%c0_9, %c0_10] : memref<1x32xf32, #tpu.memory_space<vmem>>, vector<1x32xf32>
    %23 = vector.broadcast %22 : vector<1x32xf32> to vector<16x32xf32>
    %24 = arith.addf %21, %23 : vector<16x32xf32>
    %c0_11 = arith.constant 0 : index
    %c0_12 = arith.constant 0 : index
    %25 = vector.load %arg5[%c0_11, %c0_12] : memref<16x32xf32, #tpu.memory_space<vmem>>, vector<16x32xf32>
    tpu.vector_store %arg5[%c0_11, %c0_12], %24 {strides = array<i32>} : memref<16x32xf32, #tpu.memory_space<vmem>>, vector<16x32xf32>,
    return
  }
  func.func @transform_0(%arg0: i32) -> (i32, i32) {
    %c0_i32 = arith.constant 0 : i32
    %c0_i32_0 = arith.constant 0 : i32
    return %arg0, %c0_i32 : i32, i32
  }
  func.func @transform_1(%arg0: i32) -> (i32, i32) {
    %c0_i32 = arith.constant 0 : i32
    %c0_i32_0 = arith.constant 0 : i32
    return %arg0, %c0_i32 : i32, i32
  }
  func.func @transform_2(%arg0: i32) -> (i32, i32) {
    %c0_i32 = arith.constant 0 : i32
    %c0_i32_0 = arith.constant 0 : i32
    %c0_i32_1 = arith.constant 0 : i32
    return %c0_i32, %c0_i32_0 : i32, i32
  }
  func.func @transform_3(%arg0: i32) -> (i32, i32) {
    %c0_i32 = arith.constant 0 : i32
    %c0_i32_0 = arith.constant 0 : i32
    %c0_i32_1 = arith.constant 0 : i32
    return %c0_i32, %c0_i32_0 : i32, i32
  }
  func.func @transform_4(%arg0: i32) -> (i32, i32) {
    %c0_i32 = arith.constant 0 : i32
    %c0_i32_0 = arith.constant 0 : i32
    return %arg0, %c0_i32 : i32, i32
  }
}

module attributes {stable_mosaic.version = 11 : i64} {
  func.func @_ffn_kernel(%arg0: i32, %arg1: memref<16x32xf32, #tpu.memory_space<vmem>>, %arg2: memref<32x64xf32, #tpu.memory_space<vmem>>, %arg3: memref<1x64xf32, #tpu.memory_space<vmem>>, %arg4: memref<64x32xf32, #tpu.memory_space<vmem>>, %arg5: memref<1x32xf32, #tpu.memory_space<vmem>>, %arg6: memref<16x32xf32, #tpu.memory_space<vmem>>) attributes {dimension_semantics = [#tpu.dimension_semantics<parallel>], iteration_bounds = array<i64: 1>, scalar_prefetch = 0 : i64, scratch_operands = 0 : i64, tpu.core_type = #tpu.core_type<tc>, window_params = [{transform_indices = @transform_0, window_bounds = array<i64: 16, 32>}, {pipeline_mode = #tpu.pipeline_mode<synchronous>, transform_indices = @transform_1, window_bounds = array<i64: 32, 64>}, {pipeline_mode = #tpu.pipeline_mode<synchronous>, transform_indices = @transform_2, window_bounds = array<i64: 1, 64>}, {pipeline_mode = #tpu.pipeline_mode<synchronous>, transform_indices = @transform_3, window_bounds = array<i64: 64, 32>}, {pipeline_mode = #tpu.pipeline_mode<synchronous>, transform_indices = @transform_4, window_bounds = array<i64: 1, 32>}, {transform_indices = @transform_5, window_bounds = array<i64: 16, 32>}]} {
    %c0 = arith.constant 0 : index
    %c0_0 = arith.constant 0 : index
    %0 = vector.load %arg1[%c0, %c0_0] : memref<16x32xf32, #tpu.memory_space<vmem>>, vector<16x32xf32>
    %c0_1 = arith.constant 0 : index
    %c0_2 = arith.constant 0 : index
    %1 = vector.load %arg2[%c0_1, %c0_2] : memref<32x64xf32, #tpu.memory_space<vmem>>, vector<32x64xf32>
    %cst = arith.constant dense<0.000000e+00> : vector<16x64xf32>
    %2 = tpu.matmul %0, %1, %cst {dimension_numbers = #tpu.dot_dimension_numbers<[1], [0], [0], [1], [0, 0, 1, 1], [], []>} : vector<16x32xf32>, vector<32x64xf32>, vector<16x64xf32> -> vector<16x64xf32>
    %c0_3 = arith.constant 0 : index
    %c0_4 = arith.constant 0 : index
    %3 = vector.load %arg3[%c0_3, %c0_4] : memref<1x64xf32, #tpu.memory_space<vmem>>, vector<1x64xf32>
    %4 = vector.broadcast %3 : vector<1x64xf32> to vector<16x64xf32>
    %5 = arith.addf %2, %4 : vector<16x64xf32>
    %cst_5 = arith.constant 0.000000e+00 : f32
    %6 = vector.broadcast %cst_5 : f32 to vector<16x64xf32>
    %7 = arith.maximumf %5, %6 : vector<16x64xf32>
    %c0_6 = arith.constant 0 : index
    %c0_7 = arith.constant 0 : index
    %8 = vector.load %arg4[%c0_6, %c0_7] : memref<64x32xf32, #tpu.memory_space<vmem>>, vector<64x32xf32>
    %cst_8 = arith.constant dense<0.000000e+00> : vector<16x32xf32>
    %9 = tpu.matmul %7, %8, %cst_8 {dimension_numbers = #tpu.dot_dimension_numbers<[1], [0], [0], [1], [0, 0, 1, 1], [], []>} : vector<16x64xf32>, vector<64x32xf32>, vector<16x32xf32> -> vector<16x32xf32>
    %c0_9 = arith.constant 0 : index
    %c0_10 = arith.constant 0 : index
    %10 = vector.load %arg5[%c0_9, %c0_10] : memref<1x32xf32, #tpu.memory_space<vmem>>, vector<1x32xf32>
    %11 = vector.broadcast %10 : vector<1x32xf32> to vector<16x32xf32>
    %12 = arith.addf %9, %11 : vector<16x32xf32>
    %c0_11 = arith.constant 0 : index
    %c0_12 = arith.constant 0 : index
    %13 = vector.load %arg6[%c0_11, %c0_12] : memref<16x32xf32, #tpu.memory_space<vmem>>, vector<16x32xf32>
    tpu.vector_store %arg6[%c0_11, %c0_12], %12 {strides = array<i32>} : memref<16x32xf32, #tpu.memory_space<vmem>>, vector<16x32xf32>,
    return
  }
  func.func @transform_0(%arg0: i32) -> (i32, i32) {
    %c0_i32 = arith.constant 0 : i32
    %c0_i32_0 = arith.constant 0 : i32
    return %arg0, %c0_i32 : i32, i32
  }
  func.func @transform_1(%arg0: i32) -> (i32, i32) {
    %c0_i32 = arith.constant 0 : i32
    %c0_i32_0 = arith.constant 0 : i32
    %c0_i32_1 = arith.constant 0 : i32
    return %c0_i32, %c0_i32_0 : i32, i32
  }
  func.func @transform_2(%arg0: i32) -> (i32, i32) {
    %c0_i32 = arith.constant 0 : i32
    %c0_i32_0 = arith.constant 0 : i32
    %c0_i32_1 = arith.constant 0 : i32
    return %c0_i32, %c0_i32_0 : i32, i32
  }
  func.func @transform_3(%arg0: i32) -> (i32, i32) {
    %c0_i32 = arith.constant 0 : i32
    %c0_i32_0 = arith.constant 0 : i32
    %c0_i32_1 = arith.constant 0 : i32
    return %c0_i32, %c0_i32_0 : i32, i32
  }
  func.func @transform_4(%arg0: i32) -> (i32, i32) {
    %c0_i32 = arith.constant 0 : i32
    %c0_i32_0 = arith.constant 0 : i32
    %c0_i32_1 = arith.constant 0 : i32
    return %c0_i32, %c0_i32_0 : i32, i32
  }
  func.func @transform_5(%arg0: i32) -> (i32, i32) {
    %c0_i32 = arith.constant 0 : i32
    %c0_i32_0 = arith.constant 0 : i32
    return %arg0, %c0_i32 : i32, i32
  }
}

module attributes {stable_mosaic.version = 11 : i64} {
  func.func @_mha_kernel(%arg0: i32, %arg1: memref<1x8x8xf32, #tpu.memory_space<vmem>>, %arg2: memref<1x16x8xf32, #tpu.memory_space<vmem>>, %arg3: memref<1x16x8xf32, #tpu.memory_space<vmem>>, %arg4: memref<1x8x16xf32, #tpu.memory_space<vmem>>, %arg5: memref<1x8x8xf32, #tpu.memory_space<vmem>>, %arg6: memref<1x8x16xf32, #tpu.memory_space<vmem>>) attributes {dimension_semantics = [#tpu.dimension_semantics<parallel>], iteration_bounds = array<i64: 8>, scalar_prefetch = 0 : i64, scratch_operands = 0 : i64, tpu.core_type = #tpu.core_type<tc>, window_params = [{transform_indices = @transform_0, window_bounds = array<i64: 1, 8, 8>}, {transform_indices = @transform_1, window_bounds = array<i64: 1, 16, 8>}, {transform_indices = @transform_2, window_bounds = array<i64: 1, 16, 8>}, {transform_indices = @transform_3, window_bounds = array<i64: 1, 8, 16>}, {transform_indices = @transform_4, window_bounds = array<i64: 1, 8, 8>}, {transform_indices = @transform_5, window_bounds = array<i64: 1, 8, 16>}]} {
    %c0 = arith.constant 0 : index
    %c0_0 = arith.constant 0 : index
    %c0_1 = arith.constant 0 : index
    %0 = vector.load %arg1[%c0, %c0_0, %c0_1] : memref<1x8x8xf32, #tpu.memory_space<vmem>>, vector<1x8x8xf32>
    %1 = vector.shape_cast %0 : vector<1x8x8xf32> to vector<8x8xf32>
    %c0_2 = arith.constant 0 : index
    %c0_3 = arith.constant 0 : index
    %c0_4 = arith.constant 0 : index
    %2 = vector.load %arg2[%c0_2, %c0_3, %c0_4] : memref<1x16x8xf32, #tpu.memory_space<vmem>>, vector<1x16x8xf32>
    %3 = vector.shape_cast %2 : vector<1x16x8xf32> to vector<16x8xf32>
    %c0_5 = arith.constant 0 : index
    %c0_6 = arith.constant 0 : index
    %c0_7 = arith.constant 0 : index
    %4 = vector.load %arg3[%c0_5, %c0_6, %c0_7] : memref<1x16x8xf32, #tpu.memory_space<vmem>>, vector<1x16x8xf32>
    %5 = vector.shape_cast %4 : vector<1x16x8xf32> to vector<16x8xf32>
    %c0_8 = arith.constant 0 : index
    %c0_9 = arith.constant 0 : index
    %c0_10 = arith.constant 0 : index
    %6 = vector.load %arg4[%c0_8, %c0_9, %c0_10] : memref<1x8x16xf32, #tpu.memory_space<vmem>>, vector<1x8x16xf32>
    %7 = vector.shape_cast %6 : vector<1x8x16xf32> to vector<8x16xf32>
    %8 = tpu.transpose %3, [1, 0] : vector<16x8xf32> -> vector<8x16xf32>
    %cst = arith.constant dense<0.000000e+00> : vector<8x16xf32>
    %9 = tpu.matmul %1, %8, %cst {dimension_numbers = #tpu.dot_dimension_numbers<[1], [0], [0], [1], [0, 0, 1, 1], [], []>} : vector<8x8xf32>, vector<8x16xf32>, vector<8x16xf32> -> vector<8x16xf32>
    %cst_11 = arith.constant 0.353553385 : f32
    %10 = vector.broadcast %cst_11 : f32 to vector<8x16xf32>
    %11 = arith.mulf %9, %10 : vector<8x16xf32>
    %cst_12 = arith.constant 0.000000e+00 : f32
    %12 = vector.broadcast %cst_12 : f32 to vector<8x16xf32>
    %13 = arith.cmpf oeq, %7, %12 : vector<8x16xf32>
    %cst_13 = arith.constant -1.000000e+10 : f32
    %14 = vector.broadcast %cst_13 : f32 to vector<8x16xf32>
    %15 = arith.select %13, %14, %11 : vector<8x16xi1>, vector<8x16xf32>
    %cst_14 = arith.constant dense<0xFF800000> : vector<8xf32>
    %16 = vector.multi_reduction <maximumf>, %15, %cst_14 [1] : vector<8x16xf32> to vector<8xf32>
    %17 = vector.shape_cast %16 : vector<8xf32> to vector<8x1xf32>
    %18 = vector.broadcast %17 : vector<8x1xf32> to vector<8x16xf32>
    %19 = arith.subf %15, %18 : vector<8x16xf32>
    %20 = math.exp %19 : vector<8x16xf32>
    %cst_15 = arith.constant dense<0.000000e+00> : vector<8xf32>
    %21 = vector.multi_reduction <add>, %20, %cst_15 [1] : vector<8x16xf32> to vector<8xf32>
    %22 = vector.shape_cast %21 : vector<8xf32> to vector<8x1xf32>
    %23 = vector.broadcast %22 : vector<8x1xf32> to vector<8x16xf32>
    %24 = arith.divf %20, %23 : vector<8x16xf32>
    %cst_16 = arith.constant dense<0.000000e+00> : vector<8x8xf32>
    %25 = tpu.matmul %24, %5, %cst_16 {dimension_numbers = #tpu.dot_dimension_numbers<[1], [0], [0], [1], [0, 0, 1, 1], [], []>} : vector<8x16xf32>, vector<16x8xf32>, vector<8x8xf32> -> vector<8x8xf32>
    %26 = vector.shape_cast %25 : vector<8x8xf32> to vector<1x8x8xf32>
    %c0_17 = arith.constant 0 : index
    %c0_18 = arith.constant 0 : index
    %c0_19 = arith.constant 0 : index
    %27 = vector.load %arg5[%c0_17, %c0_18, %c0_19] : memref<1x8x8xf32, #tpu.memory_space<vmem>>, vector<1x8x8xf32>
    tpu.vector_store %arg5[%c0_17, %c0_18, %c0_19], %26 {strides = array<i32>} : memref<1x8x8xf32, #tpu.memory_space<vmem>>, vector<1x8x8xf32>,
    %28 = vector.shape_cast %24 : vector<8x16xf32> to vector<1x8x16xf32>
    %c0_20 = arith.constant 0 : index
    %c0_21 = arith.constant 0 : index
    %c0_22 = arith.constant 0 : index
    %29 = vector.load %arg6[%c0_20, %c0_21, %c0_22] : memref<1x8x16xf32, #tpu.memory_space<vmem>>, vector<1x8x16xf32>
    tpu.vector_store %arg6[%c0_20, %c0_21, %c0_22], %28 {strides = array<i32>} : memref<1x8x16xf32, #tpu.memory_space<vmem>>, vector<1x8x16xf32>,
    return
  }
  func.func @transform_0(%arg0: i32) -> (i32, i32, i32) {
    %c0_i32 = arith.constant 0 : i32
    %c0_i32_0 = arith.constant 0 : i32
    %c0_i32_1 = arith.constant 0 : i32
    return %arg0, %c0_i32, %c0_i32_0 : i32, i32, i32
  }
  func.func @transform_1(%arg0: i32) -> (i32, i32, i32) {
    %c0_i32 = arith.constant 0 : i32
    %c0_i32_0 = arith.constant 0 : i32
    %c0_i32_1 = arith.constant 0 : i32
    return %arg0, %c0_i32, %c0_i32_0 : i32, i32, i32
  }
  func.func @transform_2(%arg0: i32) -> (i32, i32, i32) {
    %c0_i32 = arith.constant 0 : i32
    %c0_i32_0 = arith.constant 0 : i32
    %c0_i32_1 = arith.constant 0 : i32
    return %arg0, %c0_i32, %c0_i32_0 : i32, i32, i32
  }
  func.func @transform_3(%arg0: i32) -> (i32, i32, i32) {
    %c0_i32 = arith.constant 0 : i32
    %c0_i32_0 = arith.constant 0 : i32
    %c0_i32_1 = arith.constant 0 : i32
    return %arg0, %c0_i32, %c0_i32_0 : i32, i32, i32
  }
  func.func @transform_4(%arg0: i32) -> (i32, i32, i32) {
    %c0_i32 = arith.constant 0 : i32
    %c0_i32_0 = arith.constant 0 : i32
    %c0_i32_1 = arith.constant 0 : i32
    return %arg0, %c0_i32, %c0_i32_0 : i32, i32, i32
  }
  func.func @transform_5(%arg0: i32) -> (i32, i32, i32) {
    %c0_i32 = arith.constant 0 : i32
    %c0_i32_0 = arith.constant 0 : i32
    %c0_i32_1 = arith.constant 0 : i32
    return %arg0, %c0_i32, %c0_i32_0 : i32, i32, i32
  }
}

</mosaic_0001>

<llo_original>
// kernel: transformer_decoder_layer.14
$region0: #{transformer_decoder_layer.14}
  #allocation0 [shape = 'u32[]', space=smem, size = 0x4, offset = 0x4, fixed_abs, tag = 'smem constant byte address 0x4 - core index']
  #allocation1 [shape = 'u32[144,128]{1,0:T(1,128)}', space=vmem, size = 0x12000, scoped, tag = 'internal scratch']
  %s0 = inlined_call_operand.vmem [shape: f32[16,32], index: 0, kind: input, shape index: {}]
  %s1 = inlined_call_operand.vmem [shape: f32[32,32], index: 1, kind: input, shape index: {}]
  %s2 = inlined_call_operand.vmem [shape: f32[1,32], index: 2, kind: input, shape index: {}]
  %s3 = inlined_call_operand.vmem [shape: f32[16,32], index: 3, kind: output, shape index: {}]
  %s4 = sld [smem:[#allocation0]]
  $region22: #{transformer_decoder_layer.14} parent=0
    _
  %s6 = ssub.s32 1, %s4
  %s7 = scalar_select 0, %s6, %s4
  // Predicated region
  $region2: #{transformer_decoder_layer.14} parent=0 // pred_check
    _
  $region3: #{transformer_decoder_layer.14} parent=0 // pred_check_branch
    %9 = sbr.rel (0) target = $region5
  $region4: #{transformer_decoder_layer.14} parent=0 // pred_region
    _
  $region5: #{transformer_decoder_layer.14} parent=0 // pred_fallthru
    _
  // Predicated region
  $region6: #{transformer_decoder_layer.14} parent=0 // pred_check
    _
  $region7: #{transformer_decoder_layer.14} parent=0 // pred_check_branch
    %11 = sbr.rel (0) target = $region9
  $region8: #{transformer_decoder_layer.14} parent=0 // pred_region
    _
  $region9: #{transformer_decoder_layer.14} parent=0 // pred_fallthru
    _
  // Predicated region
  $region10: #{transformer_decoder_layer.14} parent=0 // pred_check
    _
  $region11: #{transformer_decoder_layer.14} parent=0 // pred_check_branch
    %13 = sbr.rel (0) target = $region13
  $region12: #{transformer_decoder_layer.14} parent=0 // pred_region
    _
  $region13: #{transformer_decoder_layer.14} parent=0 // pred_fallthru
    _
  %v14 = vld [vmem:[%s0] sm:$0xff]
  %v15 = vld [vmem:[%s0 + $0x8] sm:$0xff]
  %v16 = vld [vmem:[%s1] sm:$0xff]
  %v17 = vld [vmem:[%s1 + $0x8] sm:$0xff]
  %v18 = vld [vmem:[%s1 + $0x10] sm:$0xff]
  %v19 = vld [vmem:[%s1 + $0x18] sm:$0xff]
  %v20 = vld [vmem:[%s2] sm:$0x1]
  %v22 = vlaneseq
  %v23 = vshrl.u32 %v22, 7
  %v24 = vsub.s32 0, %v23
  %v25 = vrot.slane %v20, %v24
  %vm27 = vcmask 261120
  %v29 = vsel %vm27, %v14, 0
  %v32 = vsel %vm27, %v15, 0
  %34 = vmatprep.subr.mxu0 0.0
  %35 = vmatpush1.msra.mxu0 %v16
  %36 = vmatprep.subr.mxu0 0.0
  %37 = vmatpush1.msra.mxu0 %v17
  %38 = vmatprep.subr.mxu0 0.0
  %39 = vmatpush1.msra.mxu0 %v18
  %40 = vmatprep.subr.mxu0 0.0
  %41 = vmatpush1.msra.mxu0 %v19
  %42 = vmatprep.subr.mxu0 0.0
  %43 = vmatpush1.msra.mxu0 0.0
  %44 = vmatprep.subr.mxu0 0.0
  %45 = vmatpush1.msra.mxu0 0.0
  %46 = vmatprep.subr.mxu0 0.0
  %47 = vmatpush1.msra.mxu0 0.0
  %48 = vmatprep.subr.mxu0 0.0
  %49 = vmatpush1.msra.mxu0 0.0
  %50 = vmatprep.subr.mxu0 0.0
  %51 = vmatpush1.msra.mxu0 0.0
  %52 = vmatprep.subr.mxu0 0.0
  %53 = vmatpush1.msra.mxu0 0.0
  %54 = vmatprep.subr.mxu0 0.0
  %55 = vmatpush1.msra.mxu0 0.0
  %56 = vmatprep.subr.mxu0 0.0
  %57 = vmatpush1.msra.mxu0 0.0
  %58 = vmatprep.subr.mxu0 0.0
  %59 = vmatpush1.msra.mxu0 0.0
  %60 = vmatprep.subr.mxu0 0.0
  %61 = vmatpush1.msra.mxu0 0.0
  %62 = vmatprep.subr.mxu0 0.0
  %63 = vmatpush1.msra.mxu0 0.0
  %64 = vmatprep.subr.mxu0 0.0
  %65 = vmatpush1.msra.mxu0 0.0
  %66 = vmatprep.subr.mxu0 0.0
  %67 = vmatpush1.msra.mxu0 0.0
  %68 = vmatprep.subr.mxu0 0.0
  %69 = vmatpush1.msra.mxu0 0.0
  %70 = vmatprep.subr.mxu0 0.0
  %71 = vmatpush1.msra.mxu0 0.0
  %72 = vmatprep.subr.mxu0 0.0
  %73 = vmatpush1.msra.mxu0 0.0
  %74 = vmatprep.subr.mxu0 0.0
  %75 = vmatpush1.msra.mxu0 0.0
  %76 = vmatprep.subr.mxu0 0.0
  %77 = vmatpush1.msra.mxu0 0.0
  %78 = vmatprep.subr.mxu0 0.0
  %79 = vmatpush1.msra.mxu0 0.0
  %80 = vmatprep.subr.mxu0 0.0
  %81 = vmatpush1.msra.mxu0 0.0
  %82 = vmatprep.subr.mxu0 0.0
  %83 = vmatpush1.msra.mxu0 0.0
  %84 = vmatprep.subr.mxu0 0.0
  %85 = vmatpush1.msra.mxu0 0.0
  %86 = vmatprep.subr.mxu0 0.0
  %87 = vmatpush1.msra.mxu0 0.0
  %88 = vmatprep.subr.mxu0 0.0
  %89 = vmatpush1.msra.mxu0 0.0
  %90 = vmatprep.subr.mxu0 0.0
  %91 = vmatpush1.msra.mxu0 0.0
  %92 = vmatprep.subr.mxu0 0.0
  %93 = vmatpush1.msra.mxu0 0.0
  %94 = vmatprep.subr.mxu0 0.0
  %95 = vmatpush1.msra.mxu0 0.0
  %96 = vmatprep.subr.mxu0 0.0
  %97 = vmatpush1.msra.mxu0 0.0
  %98 = vmatprep.mubr.f32.mxu0 0.0
  %99 = vmatmul.mubr.f32.gmra.mrb[0].mxu0 %v29
  %v100 = vpop.f32.mrb[0].mxu0
  %v101 = vadd.f32 %v25, %v100
  %v102 = vpop.f32.mrb[0].mxu0
  %103 = vmatprep.mubr.f32.mxu0 0.0
  %104 = vmatmul.mubr.f32.gmra.mrb[0].mxu0 %v32
  %v105 = vpop.f32.mrb[0].mxu0
  %v106 = vadd.f32 %v25, %v105
  %v107 = vpop.f32.mrb[0].mxu0
  %108 = vdwg.mxu0
  %109 = vst.msk [vmem:[%s3] sm:$0xff] %vm27, %v101
  %110 = vst.msk [vmem:[%s3 + $0x8] sm:$0xff] %vm27, %v106
  // Predicated region
  $region14: #{transformer_decoder_layer.14} parent=0 // pred_check
    _
  $region15: #{transformer_decoder_layer.14} parent=0 // pred_check_branch
    %112 = sbr.rel (0) target = $region17
  $region16: #{transformer_decoder_layer.14} parent=0 // pred_region
    _
  $region17: #{transformer_decoder_layer.14} parent=0 // pred_fallthru
    _
  // Predicated region
  $region18: #{transformer_decoder_layer.14} parent=0 // pred_check
    _
  $region19: #{transformer_decoder_layer.14} parent=0 // pred_check_branch
    %114 = sbr.rel (0) target = $region21
  $region20: #{transformer_decoder_layer.14} parent=0 // pred_region
    _
  $region21: #{transformer_decoder_layer.14} parent=0 // pred_fallthru
    _

// kernel: transformer_decoder_layer.19
$region0: #{transformer_decoder_layer.19}
  #allocation0 [shape = 'u32[]', space=smem, size = 0x4, offset = 0x4, fixed_abs, tag = 'smem constant byte address 0x4 - core index']
  #allocation1 [shape = 'u32[144,128]{1,0:T(1,128)}', space=vmem, size = 0x12000, scoped, tag = 'internal scratch']
  %s0 = inlined_call_operand.vmem [shape: f32[16,32], index: 0, kind: input, shape index: {}]
  %s1 = inlined_call_operand.vmem [shape: f32[16,32], index: 1, kind: input, shape index: {}]
  %s2 = inlined_call_operand.vmem [shape: f32[1,32], index: 2, kind: input, shape index: {}]
  %s3 = inlined_call_operand.vmem [shape: f32[1,32], index: 3, kind: input, shape index: {}]
  %s4 = inlined_call_operand.vmem [shape: f32[16,32], index: 4, kind: output, shape index: {}]
  %s5 = sld [smem:[#allocation0]]
  $region26: #{transformer_decoder_layer.19} parent=0
    _
  %s7 = ssub.s32 1, %s5
  %s8 = scalar_select 0, %s7, %s5
  // Predicated region
  $region2: #{transformer_decoder_layer.19} parent=0 // pred_check
    _
  $region3: #{transformer_decoder_layer.19} parent=0 // pred_check_branch
    %10 = sbr.rel (0) target = $region5
  $region4: #{transformer_decoder_layer.19} parent=0 // pred_region
    _
  $region5: #{transformer_decoder_layer.19} parent=0 // pred_fallthru
    _
  // Predicated region
  $region6: #{transformer_decoder_layer.19} parent=0 // pred_check
    _
  $region7: #{transformer_decoder_layer.19} parent=0 // pred_check_branch
    %12 = sbr.rel (0) target = $region9
  $region8: #{transformer_decoder_layer.19} parent=0 // pred_region
    _
  $region9: #{transformer_decoder_layer.19} parent=0 // pred_fallthru
    _
  // Predicated region
  $region10: #{transformer_decoder_layer.19} parent=0 // pred_check
    _
  $region11: #{transformer_decoder_layer.19} parent=0 // pred_check_branch
    %14 = sbr.rel (0) target = $region13
  $region12: #{transformer_decoder_layer.19} parent=0 // pred_region
    _
  $region13: #{transformer_decoder_layer.19} parent=0 // pred_fallthru
    _
  // Predicated region
  $region14: #{transformer_decoder_layer.19} parent=0 // pred_check
    _
  $region15: #{transformer_decoder_layer.19} parent=0 // pred_check_branch
    %16 = sbr.rel (0) target = $region17
  $region16: #{transformer_decoder_layer.19} parent=0 // pred_region
    _
  $region17: #{transformer_decoder_layer.19} parent=0 // pred_fallthru
    _
  %v17 = vld [vmem:[%s0] sm:$0xff]
  %v18 = vld [vmem:[%s0 + $0x8] sm:$0xff]
  %v19 = vld [vmem:[%s1] sm:$0xff]
  %v20 = vld [vmem:[%s1 + $0x8] sm:$0xff]
  %v21 = vadd.f32 %v17, %v19
  %v22 = vadd.f32 %v18, %v20
  %vm23 = vcmask 261120
  %v24 = vsel %vm23, %v21, 0.0
  %25 = vadd.xlane.f32.xlu0 %v24
  %v26 = vpop.xlane.xlu0 %25
  %v27 = vsel %vm23, %v22, 0.0
  %28 = vadd.xlane.f32.xlu0 %v27
  %v29 = vpop.xlane.xlu0 %28
  %v30 = vrcp.pop 32.0
  %v31 = vmul.f32 %v26, %v30
  %v32 = vmul.f32 %v29, %v30
  %v33 = vsub.f32 %v21, %v31
  %v34 = vsub.f32 %v22, %v32
  %v35 = vmul.f32 %v33, %v33
  %v36 = vmul.f32 %v34, %v34
  %v37 = vsel %vm23, %v35, 0.0
  %38 = vadd.xlane.f32.xlu0 %v37
  %v39 = vpop.xlane.xlu0 %38
  %v40 = vsel %vm23, %v36, 0.0
  %41 = vadd.xlane.f32.xlu0 %v40
  %v42 = vpop.xlane.xlu0 %41
  %v43 = vmul.f32 %v39, %v30
  %v44 = vmul.f32 %v42, %v30
  %v45 = vadd.f32 %v43, 1e-05
  %v46 = vadd.f32 %v44, 1e-05
  %v47 = vrsqrt.pop %v45
  %v48 = vrsqrt.pop %v46
  %v49 = vmul.f32 %v33, %v47
  %v50 = vmul.f32 %v34, %v48
  %v51 = vld [vmem:[%s2] sm:$0x1]
  %v53 = vlaneseq
  %v54 = vshrl.u32 %v53, 7
  %v55 = vsub.s32 0, %v54
  %v56 = vrot.slane %v51, %v55
  %v58 = vmul.f32 %v49, %v56
  %v59 = vmul.f32 %v50, %v56
  %v60 = vld [vmem:[%s3] sm:$0x1]
  %v62 = vlaneseq
  %v63 = vshrl.u32 %v62, 7
  %v64 = vsub.s32 0, %v63
  %v65 = vrot.slane %v60, %v64
  %v67 = vadd.f32 %v58, %v65
  %v68 = vadd.f32 %v59, %v65
  %69 = vst.msk [vmem:[%s4] sm:$0xff] %vm23, %v67
  %70 = vst.msk [vmem:[%s4 + $0x8] sm:$0xff] %vm23, %v68
  // Predicated region
  $region18: #{transformer_decoder_layer.19} parent=0 // pred_check
    _
  $region19: #{transformer_decoder_layer.19} parent=0 // pred_check_branch
    %72 = sbr.rel (0) target = $region21
  $region20: #{transformer_decoder_layer.19} parent=0 // pred_region
    _
  $region21: #{transformer_decoder_layer.19} parent=0 // pred_fallthru
    _
  // Predicated region
  $region22: #{transformer_decoder_layer.19} parent=0 // pred_check
    _
  $region23: #{transformer_decoder_layer.19} parent=0 // pred_check_branch
    %74 = sbr.rel (0) target = $region25
  $region24: #{transformer_decoder_layer.19} parent=0 // pred_region
    _
  $region25: #{transformer_decoder_layer.19} parent=0 // pred_fallthru
    _

// kernel: transformer_decoder_layer.21
$region0: #{transformer_decoder_layer.21}
  #allocation0 [shape = 'u32[]', space=smem, size = 0x4, offset = 0x4, fixed_abs, tag = 'smem constant byte address 0x4 - core index']
  #allocation1 [shape = 'u32[144,128]{1,0:T(1,128)}', space=vmem, size = 0x12000, scoped, tag = 'internal scratch']
  %s0 = inlined_call_operand.vmem [shape: f32[32,32], index: 0, kind: input, shape index: {}]
  %s1 = inlined_call_operand.vmem [shape: f32[32,32], index: 1, kind: input, shape index: {}]
  %s2 = inlined_call_operand.vmem [shape: f32[1,32], index: 2, kind: input, shape index: {}]
  %s3 = inlined_call_operand.vmem [shape: f32[32,32], index: 3, kind: output, shape index: {}]
  %s4 = sld [smem:[#allocation0]]
  $region22: #{transformer_decoder_layer.21} parent=0
    _
  %s6 = ssub.s32 1, %s4
  %s7 = scalar_select 0, %s6, %s4
  // Predicated region
  $region2: #{transformer_decoder_layer.21} parent=0 // pred_check
    _
  $region3: #{transformer_decoder_layer.21} parent=0 // pred_check_branch
    %9 = sbr.rel (0) target = $region5
  $region4: #{transformer_decoder_layer.21} parent=0 // pred_region
    _
  $region5: #{transformer_decoder_layer.21} parent=0 // pred_fallthru
    _
  // Predicated region
  $region6: #{transformer_decoder_layer.21} parent=0 // pred_check
    _
  $region7: #{transformer_decoder_layer.21} parent=0 // pred_check_branch
    %11 = sbr.rel (0) target = $region9
  $region8: #{transformer_decoder_layer.21} parent=0 // pred_region
    _
  $region9: #{transformer_decoder_layer.21} parent=0 // pred_fallthru
    _
  // Predicated region
  $region10: #{transformer_decoder_layer.21} parent=0 // pred_check
    _
  $region11: #{transformer_decoder_layer.21} parent=0 // pred_check_branch
    %13 = sbr.rel (0) target = $region13
  $region12: #{transformer_decoder_layer.21} parent=0 // pred_region
    _
  $region13: #{transformer_decoder_layer.21} parent=0 // pred_fallthru
    _
  %v14 = vld [vmem:[%s0] sm:$0xff]
  %v15 = vld [vmem:[%s0 + $0x8] sm:$0xff]
  %v16 = vld [vmem:[%s0 + $0x10] sm:$0xff]
  %v17 = vld [vmem:[%s0 + $0x18] sm:$0xff]
  %v18 = vld [vmem:[%s1] sm:$0xff]
  %v19 = vld [vmem:[%s1 + $0x8] sm:$0xff]
  %v20 = vld [vmem:[%s1 + $0x10] sm:$0xff]
  %v21 = vld [vmem:[%s1 + $0x18] sm:$0xff]
  %v22 = vld [vmem:[%s2] sm:$0x1]
  %v24 = vlaneseq
  %v25 = vshrl.u32 %v24, 7
  %v26 = vsub.s32 0, %v25
  %v27 = vrot.slane %v22, %v26
  %vm29 = vcmask 261120
  %v31 = vsel %vm29, %v14, 0
  %v34 = vsel %vm29, %v15, 0
  %v37 = vsel %vm29, %v16, 0
  %v40 = vsel %vm29, %v17, 0
  %42 = vmatprep.subr.mxu0 0.0
  %43 = vmatpush1.msra.mxu0 %v18
  %44 = vmatprep.subr.mxu0 0.0
  %45 = vmatpush1.msra.mxu0 %v19
  %46 = vmatprep.subr.mxu0 0.0
  %47 = vmatpush1.msra.mxu0 %v20
  %48 = vmatprep.subr.mxu0 0.0
  %49 = vmatpush1.msra.mxu0 %v21
  %50 = vmatprep.subr.mxu0 0.0
  %51 = vmatpush1.msra.mxu0 0.0
  %52 = vmatprep.subr.mxu0 0.0
  %53 = vmatpush1.msra.mxu0 0.0
  %54 = vmatprep.subr.mxu0 0.0
  %55 = vmatpush1.msra.mxu0 0.0
  %56 = vmatprep.subr.mxu0 0.0
  %57 = vmatpush1.msra.mxu0 0.0
  %58 = vmatprep.subr.mxu0 0.0
  %59 = vmatpush1.msra.mxu0 0.0
  %60 = vmatprep.subr.mxu0 0.0
  %61 = vmatpush1.msra.mxu0 0.0
  %62 = vmatprep.subr.mxu0 0.0
  %63 = vmatpush1.msra.mxu0 0.0
  %64 = vmatprep.subr.mxu0 0.0
  %65 = vmatpush1.msra.mxu0 0.0
  %66 = vmatprep.subr.mxu0 0.0
  %67 = vmatpush1.msra.mxu0 0.0
  %68 = vmatprep.subr.mxu0 0.0
  %69 = vmatpush1.msra.mxu0 0.0
  %70 = vmatprep.subr.mxu0 0.0
  %71 = vmatpush1.msra.mxu0 0.0
  %72 = vmatprep.subr.mxu0 0.0
  %73 = vmatpush1.msra.mxu0 0.0
  %74 = vmatprep.subr.mxu0 0.0
  %75 = vmatpush1.msra.mxu0 0.0
  %76 = vmatprep.subr.mxu0 0.0
  %77 = vmatpush1.msra.mxu0 0.0
  %78 = vmatprep.subr.mxu0 0.0
  %79 = vmatpush1.msra.mxu0 0.0
  %80 = vmatprep.subr.mxu0 0.0
  %81 = vmatpush1.msra.mxu0 0.0
  %82 = vmatprep.subr.mxu0 0.0
  %83 = vmatpush1.msra.mxu0 0.0
  %84 = vmatprep.subr.mxu0 0.0
  %85 = vmatpush1.msra.mxu0 0.0
  %86 = vmatprep.subr.mxu0 0.0
  %87 = vmatpush1.msra.mxu0 0.0
  %88 = vmatprep.subr.mxu0 0.0
  %89 = vmatpush1.msra.mxu0 0.0
  %90 = vmatprep.subr.mxu0 0.0
  %91 = vmatpush1.msra.mxu0 0.0
  %92 = vmatprep.subr.mxu0 0.0
  %93 = vmatpush1.msra.mxu0 0.0
  %94 = vmatprep.subr.mxu0 0.0
  %95 = vmatpush1.msra.mxu0 0.0
  %96 = vmatprep.subr.mxu0 0.0
  %97 = vmatpush1.msra.mxu0 0.0
  %98 = vmatprep.subr.mxu0 0.0
  %99 = vmatpush1.msra.mxu0 0.0
  %100 = vmatprep.subr.mxu0 0.0
  %101 = vmatpush1.msra.mxu0 0.0
  %102 = vmatprep.subr.mxu0 0.0
  %103 = vmatpush1.msra.mxu0 0.0
  %104 = vmatprep.subr.mxu0 0.0
  %105 = vmatpush1.msra.mxu0 0.0
  %106 = vmatprep.mubr.f32.mxu0 0.0
  %107 = vmatmul.mubr.f32.gmra.mrb[0].mxu0 %v31
  %v108 = vpop.f32.mrb[0].mxu0
  %v109 = vadd.f32 %v27, %v108
  %v110 = vpop.f32.mrb[0].mxu0
  %111 = vmatprep.mubr.f32.mxu0 0.0
  %112 = vmatmul.mubr.f32.gmra.mrb[0].mxu0 %v34
  %v113 = vpop.f32.mrb[0].mxu0
  %v114 = vadd.f32 %v27, %v113
  %v115 = vpop.f32.mrb[0].mxu0
  %116 = vmatprep.mubr.f32.mxu0 0.0
  %117 = vmatmul.mubr.f32.gmra.mrb[0].mxu0 %v37
  %v118 = vpop.f32.mrb[0].mxu0
  %v119 = vadd.f32 %v27, %v118
  %v120 = vpop.f32.mrb[0].mxu0
  %121 = vmatprep.mubr.f32.mxu0 0.0
  %122 = vmatmul.mubr.f32.gmra.mrb[0].mxu0 %v40
  %v123 = vpop.f32.mrb[0].mxu0
  %v124 = vadd.f32 %v27, %v123
  %v125 = vpop.f32.mrb[0].mxu0
  %126 = vdwg.mxu0
  %127 = vst.msk [vmem:[%s3] sm:$0xff] %vm29, %v109
  %128 = vst.msk [vmem:[%s3 + $0x8] sm:$0xff] %vm29, %v114
  %129 = vst.msk [vmem:[%s3 + $0x10] sm:$0xff] %vm29, %v119
  %130 = vst.msk [vmem:[%s3 + $0x18] sm:$0xff] %vm29, %v124
  // Predicated region
  $region14: #{transformer_decoder_layer.21} parent=0 // pred_check
    _
  $region15: #{transformer_decoder_layer.21} parent=0 // pred_check_branch
    %132 = sbr.rel (0) target = $region17
  $region16: #{transformer_decoder_layer.21} parent=0 // pred_region
    _
  $region17: #{transformer_decoder_layer.21} parent=0 // pred_fallthru
    _
  // Predicated region
  $region18: #{transformer_decoder_layer.21} parent=0 // pred_check
    _
  $region19: #{transformer_decoder_layer.21} parent=0 // pred_check_branch
    %134 = sbr.rel (0) target = $region21
  $region20: #{transformer_decoder_layer.21} parent=0 // pred_region
    _
  $region21: #{transformer_decoder_layer.21} parent=0 // pred_fallthru
    _

// kernel: transformer_decoder_layer.17
$region0: #{transformer_decoder_layer.17}
  #allocation0 [shape = 'u32[]', space=smem, size = 0x4, offset = 0x4, fixed_abs, tag = 'smem constant byte address 0x4 - core index']
  #allocation1 [shape = 'u32[144,128]{1,0:T(1,128)}', space=vmem, size = 0x12000, scoped, tag = 'internal scratch']
  %s0 = inlined_call_operand.vmem [shape: f32[8,8,8], index: 0, kind: input, shape index: {}]
  %s1 = inlined_call_operand.vmem [shape: f32[8,8,8], index: 1, kind: input, shape index: {}]
  %s2 = inlined_call_operand.vmem [shape: f32[8,8,8], index: 2, kind: input, shape index: {}]
  %s3 = inlined_call_operand.vmem [shape: f32[8,8,8], index: 3, kind: input, shape index: {}]
  %s4 = inlined_call_operand.vmem [shape: f32[8,8,8], index: 4, kind: output, shape index: {0}]
  %s5 = inlined_call_operand.hbm [shape: f32[8,8,8], index: 5, kind: output, shape index: {1}]
  %6 = xla_tuple %s4, %s5
  %s7 = sld [smem:[#allocation0]]
  $region57: #{transformer_decoder_layer.17} parent=0
    _
  %s9 = ssub.s32 1, %s7
  %s10 = scalar_select 0, %s9, %s7
  $region1: #{transformer_decoder_layer.17} parent=0
    #allocation2 [shape = 'u8[8192]{0}', space=vmem, size = 0x2000, scoped, tag = 'output window, operand 1']
    #allocation3 [shape = 's32[2]{0}', space=sflag, size = 0x8, scoped, tag = 'scoped memory for transformer_decoder_layer.17']
    %11 = vsyncpa [#allocation3], 0
    %s12 = scalar_lea.sflag [#allocation3], 1
    %13 = vsyncpa %s12, 0
    loop: start=0, step=1, limit=10
    $region2: #{transformer_decoder_layer.17} parent=1 // loop_pre_header
      _
    $region3: #{transformer_decoder_layer.17} parent=1 // loop_header
      %s15 = sphi 0, %s19
      %p16 = scmp.ge.s32.totalorder %s15, 10
      %s25 = sphi 0, %s27
      %s28 = sphi 0, %s25
      %s29 = sphi 0, %s28
      %s45 = sphi 0, %s29
      %s51 = sphi 0, %s53
      %s54 = sphi 0, %s51
      %s55 = sphi 0, %s54
      %s71 = sphi 0, %s55
      %s77 = sphi 0, %s79
      %s80 = sphi 0, %s77
      %s81 = sphi 0, %s80
      %s97 = sphi 0, %s81
      %s103 = sphi 0, %s105
      %s106 = sphi 0, %s103
      %s107 = sphi 0, %s106
      %s123 = sphi 0, %s107
      %s129 = sphi 0, %s131
      %s132 = sphi 0, %s129
      %s133 = sphi 0, %s132
      %s149 = sphi 0, %s133
      %s155 = sphi 0, %s157
      %s158 = sphi 0, %s155
      %s159 = sphi 0, %s158
      %s175 = sphi 0, %s159
    $region4: #{transformer_decoder_layer.17} parent=1 // loop_header_branch
      %18 = sbr.rel (%p16) target = $region8
    $region5: #{transformer_decoder_layer.17} parent=1 // loop_body
      %s20 = ssub.s32 %s15, 1
      %s21 = ssub.s32 %s15, 2
      %s22 = sadd.s32 %s15, 1
      %s23 = ssub.s32 %s15, %s22
      %p24 = scmp.eq.s32.totalorder %s23, 0
      %s26 = sadd.s32 %s25, 1
      %s27 = scalar_select %p24, %s25, %s26
      %p30 = pneg %p24
      %p31 = scmp.eq.s32.totalorder %s15, 7
      %p32 = por %p30, %p31
      %p33 = scmp.ne.s32.totalorder %s25, %s28
      %p34 = scmp.eq.s32.totalorder %s15, 0
      %p35 = por %p33, %p34
      %p36 = scmp.ne.s32.totalorder %s25, %s28
      %p37 = scmp.eq.s32.totalorder %s20, 7
      %p38 = por %p36, %p37
      %p39 = scmp.ne.s32.totalorder %s28, %s29
      %p40 = scmp.eq.s32.totalorder %s20, 0
      %p41 = por %p39, %p40
      %p42 = scmp.ne.s32.totalorder %s28, %s29
      %p43 = scmp.eq.s32.totalorder %s21, 7
      %p44 = por %p42, %p43
      %p46 = scmp.ne.s32.totalorder %s29, %s45
      %p47 = scmp.eq.s32.totalorder %s21, 0
      %p48 = por %p46, %p47
      %s49 = ssub.s32 %s15, %s22
      %p50 = scmp.eq.s32.totalorder %s49, 0
      %s52 = sadd.s32 %s51, 1
      %s53 = scalar_select %p50, %s51, %s52
      %p56 = pneg %p50
      %p57 = scmp.eq.s32.totalorder %s15, 7
      %p58 = por %p56, %p57
      %p59 = scmp.ne.s32.totalorder %s51, %s54
      %p60 = scmp.eq.s32.totalorder %s15, 0
      %p61 = por %p59, %p60
      %p62 = scmp.ne.s32.totalorder %s51, %s54
      %p63 = scmp.eq.s32.totalorder %s20, 7
      %p64 = por %p62, %p63
      %p65 = scmp.ne.s32.totalorder %s54, %s55
      %p66 = scmp.eq.s32.totalorder %s20, 0
      %p67 = por %p65, %p66
      %p68 = scmp.ne.s32.totalorder %s54, %s55
      %p69 = scmp.eq.s32.totalorder %s21, 7
      %p70 = por %p68, %p69
      %p72 = scmp.ne.s32.totalorder %s55, %s71
      %p73 = scmp.eq.s32.totalorder %s21, 0
      %p74 = por %p72, %p73
      %s75 = ssub.s32 %s15, %s22
      %p76 = scmp.eq.s32.totalorder %s75, 0
      %s78 = sadd.s32 %s77, 1
      %s79 = scalar_select %p76, %s77, %s78
      %p82 = pneg %p76
      %p83 = scmp.eq.s32.totalorder %s15, 7
      %p84 = por %p82, %p83
      %p85 = scmp.ne.s32.totalorder %s77, %s80
      %p86 = scmp.eq.s32.totalorder %s15, 0
      %p87 = por %p85, %p86
      %p88 = scmp.ne.s32.totalorder %s77, %s80
      %p89 = scmp.eq.s32.totalorder %s20, 7
      %p90 = por %p88, %p89
      %p91 = scmp.ne.s32.totalorder %s80, %s81
      %p92 = scmp.eq.s32.totalorder %s20, 0
      %p93 = por %p91, %p92
      %p94 = scmp.ne.s32.totalorder %s80, %s81
      %p95 = scmp.eq.s32.totalorder %s21, 7
      %p96 = por %p94, %p95
      %p98 = scmp.ne.s32.totalorder %s81, %s97
      %p99 = scmp.eq.s32.totalorder %s21, 0
      %p100 = por %p98, %p99
      %s101 = ssub.s32 %s15, %s22
      %p102 = scmp.eq.s32.totalorder %s101, 0
      %s104 = sadd.s32 %s103, 1
      %s105 = scalar_select %p102, %s103, %s104
      %p108 = pneg %p102
      %p109 = scmp.eq.s32.totalorder %s15, 7
      %p110 = por %p108, %p109
      %p111 = scmp.ne.s32.totalorder %s103, %s106
      %p112 = scmp.eq.s32.totalorder %s15, 0
      %p113 = por %p111, %p112
      %p114 = scmp.ne.s32.totalorder %s103, %s106
      %p115 = scmp.eq.s32.totalorder %s20, 7
      %p116 = por %p114, %p115
      %p117 = scmp.ne.s32.totalorder %s106, %s107
      %p118 = scmp.eq.s32.totalorder %s20, 0
      %p119 = por %p117, %p118
      %p120 = scmp.ne.s32.totalorder %s106, %s107
      %p121 = scmp.eq.s32.totalorder %s21, 7
      %p122 = por %p120, %p121
      %p124 = scmp.ne.s32.totalorder %s107, %s123
      %p125 = scmp.eq.s32.totalorder %s21, 0
      %p126 = por %p124, %p125
      %s127 = ssub.s32 %s15, %s22
      %p128 = scmp.eq.s32.totalorder %s127, 0
      %s130 = sadd.s32 %s129, 1
      %s131 = scalar_select %p128, %s129, %s130
      %p134 = pneg %p128
      %p135 = scmp.eq.s32.totalorder %s15, 7
      %p136 = por %p134, %p135
      %p137 = scmp.ne.s32.totalorder %s129, %s132
      %p138 = scmp.eq.s32.totalorder %s15, 0
      %p139 = por %p137, %p138
      %p140 = scmp.ne.s32.totalorder %s129, %s132
      %p141 = scmp.eq.s32.totalorder %s20, 7
      %p142 = por %p140, %p141
      %p143 = scmp.ne.s32.totalorder %s132, %s133
      %p144 = scmp.eq.s32.totalorder %s20, 0
      %p145 = por %p143, %p144
      %p146 = scmp.ne.s32.totalorder %s132, %s133
      %p147 = scmp.eq.s32.totalorder %s21, 7
      %p148 = por %p146, %p147
      %p150 = scmp.ne.s32.totalorder %s133, %s149
      %p151 = scmp.eq.s32.totalorder %s21, 0
      %p152 = por %p150, %p151
      %s153 = ssub.s32 %s15, %s22
      %p154 = scmp.eq.s32.totalorder %s153, 0
      %s156 = sadd.s32 %s155, 1
      %s157 = scalar_select %p154, %s155, %s156
      %p160 = pneg %p154
      %p161 = scmp.eq.s32.totalorder %s15, 7
      %p162 = por %p160, %p161
      %p163 = scmp.ne.s32.totalorder %s155, %s158
      %p164 = scmp.eq.s32.totalorder %s15, 0
      %p165 = por %p163, %p164
      %p166 = scmp.ne.s32.totalorder %s155, %s158
      %p167 = scmp.eq.s32.totalorder %s20, 7
      %p168 = por %p166, %p167
      %p169 = scmp.ne.s32.totalorder %s158, %s159
      %p170 = scmp.eq.s32.totalorder %s20, 0
      %p171 = por %p169, %p170
      %p172 = scmp.ne.s32.totalorder %s158, %s159
      %p173 = scmp.eq.s32.totalorder %s21, 7
      %p174 = por %p172, %p173
      %p176 = scmp.ne.s32.totalorder %s159, %s175
      %p177 = scmp.eq.s32.totalorder %s21, 0
      %p178 = por %p176, %p177
      %p179 = scmp.le.s32.totalorder 1, %s15
      %p180 = scmp.lt.s32.totalorder %s15, 9
      %p181 = pnand %p179, %p180
      %p182 = pneg %p181
      // Predicated region
      $region9: #{transformer_decoder_layer.17} parent=5 // pred_check
        _
      $region10: #{transformer_decoder_layer.17} parent=5 // pred_check_branch
        %184 = sbr.rel (%p181) target = $region12
      $region11: #{transformer_decoder_layer.17} parent=5 // pred_region
        %s185 = ssub.s32 %s15, 1
      $region12: #{transformer_decoder_layer.17} parent=5 // pred_fallthru
        _
      %p186 = scmp.lt.s32.totalorder %s15, 8
      // Predicated region
      $region13: #{transformer_decoder_layer.17} parent=5 // pred_check
        %p187 = pneg %p186
      $region14: #{transformer_decoder_layer.17} parent=5 // pred_check_branch
        %189 = sbr.rel (%p187) target = $region16
      $region15: #{transformer_decoder_layer.17} parent=5 // pred_region
        // Predicated region
        $region17: #{transformer_decoder_layer.17} parent=15 // pred_check
          %p190 = pneg %p35
        $region18: #{transformer_decoder_layer.17} parent=15 // pred_check_branch
          %192 = sbr.rel (%p190) target = $region20
        $region19: #{transformer_decoder_layer.17} parent=15 // pred_region
          %p193 = scmp.lt.s32.totalorder %s15, 7
          %s194 = scalar_select %p193, %s15, 7
          %s195 = smul.addr %s194, 8
          %s196 = scalar_lea.vmem %s0, %s195
        $region20: #{transformer_decoder_layer.17} parent=15 // pred_fallthru
          _
        // Predicated region
        $region21: #{transformer_decoder_layer.17} parent=15 // pred_check
          %p197 = pneg %p61
        $region22: #{transformer_decoder_layer.17} parent=15 // pred_check_branch
          %199 = sbr.rel (%p197) target = $region24
        $region23: #{transformer_decoder_layer.17} parent=15 // pred_region
          %p200 = scmp.lt.s32.totalorder %s15, 7
          %s201 = scalar_select %p200, %s15, 7
          %s202 = smul.addr %s201, 8
          %s203 = scalar_lea.vmem %s1, %s202
        $region24: #{transformer_decoder_layer.17} parent=15 // pred_fallthru
          _
        // Predicated region
        $region25: #{transformer_decoder_layer.17} parent=15 // pred_check
          %p204 = pneg %p87
        $region26: #{transformer_decoder_layer.17} parent=15 // pred_check_branch
          %206 = sbr.rel (%p204) target = $region28
        $region27: #{transformer_decoder_layer.17} parent=15 // pred_region
          %p207 = scmp.lt.s32.totalorder %s15, 7
          %s208 = scalar_select %p207, %s15, 7
          %s209 = smul.addr %s208, 8
          %s210 = scalar_lea.vmem %s2, %s209
        $region28: #{transformer_decoder_layer.17} parent=15 // pred_fallthru
          _
        // Predicated region
        $region29: #{transformer_decoder_layer.17} parent=15 // pred_check
          %p211 = pneg %p113
        $region30: #{transformer_decoder_layer.17} parent=15 // pred_check_branch
          %213 = sbr.rel (%p211) target = $region32
        $region31: #{transformer_decoder_layer.17} parent=15 // pred_region
          %p214 = scmp.lt.s32.totalorder %s15, 7
          %s215 = scalar_select %p214, %s15, 7
          %s216 = smul.addr %s215, 8
          %s217 = scalar_lea.vmem %s3, %s216
        $region32: #{transformer_decoder_layer.17} parent=15 // pred_fallthru
          _
      $region16: #{transformer_decoder_layer.17} parent=5 // pred_fallthru
        _
      %p218 = scmp.le.s32.totalorder 1, %s15
      %p219 = scmp.lt.s32.totalorder %s15, 9
      %p220 = pnand %p218, %p219
      %p221 = pneg %p220
      // Predicated region
      $region33: #{transformer_decoder_layer.17} parent=5 // pred_check
        _
      $region34: #{transformer_decoder_layer.17} parent=5 // pred_check_branch
        %223 = sbr.rel (%p220) target = $region36
      $region35: #{transformer_decoder_layer.17} parent=5 // pred_region
        %s224 = ssub.s32 %s15, 1
        %p225 = scmp.lt.s32.totalorder %s20, 7
        %s226 = scalar_select %p225, %s20, 7
        %s227 = smul.addr %s226, 8
        %s228 = scalar_lea.vmem %s0, %s227
        %p229 = pneg %p41
        %p230 = pneg %p38
        %p231 = scmp.lt.s32.totalorder %s20, 7
        %s232 = scalar_select %p231, %s20, 7
        %s233 = smul.addr %s232, 8
        %s234 = scalar_lea.vmem %s1, %s233
        %p235 = pneg %p67
        %p236 = pneg %p64
        %p237 = scmp.lt.s32.totalorder %s20, 7
        %s238 = scalar_select %p237, %s20, 7
        %s239 = smul.addr %s238, 8
        %s240 = scalar_lea.vmem %s2, %s239
        %p241 = pneg %p93
        %p242 = pneg %p90
        %p243 = scmp.lt.s32.totalorder %s20, 7
        %s244 = scalar_select %p243, %s20, 7
        %s245 = smul.addr %s244, 8
        %s246 = scalar_lea.vmem %s3, %s245
        %p247 = pneg %p119
        %p248 = pneg %p116
        %p249 = pneg %p145
        %p250 = pneg %p142
        %p251 = scmp.lt.s32.totalorder %s20, 7
        %s252 = scalar_select %p251, %s20, 7
        %s253 = smul.addr %s252, 8
        %s254 = scalar_lea.vmem %s4, %s253
        %p255 = pneg %p171
        %p256 = pneg %p168
        %s257 = sand.u32 %s158, 1
        %s258 = scalar_lea.sflag [#allocation3], %s257
        %s259 = sand.u32 %s158, 1
        %s260 = smul.addr %s259, 8
        %s261 = scalar_lea.vmem [#allocation2], %s260
        %p262 = scmp.lt.s32.totalorder %s20, 7
        %s263 = scalar_select %p262, %s20, 7
        %s264 = smul.addr %s263, 8
        %s265 = scalar_lea.vmem %s0, %s264
        %p266 = scmp.lt.s32.totalorder %s20, 7
        %s267 = scalar_select %p266, %s20, 7
        %s268 = smul.addr %s267, 8
        %s269 = scalar_lea.vmem %s1, %s268
        %p270 = scmp.lt.s32.totalorder %s20, 7
        %s271 = scalar_select %p270, %s20, 7
        %s272 = smul.addr %s271, 8
        %s273 = scalar_lea.vmem %s2, %s272
        %p274 = scmp.lt.s32.totalorder %s20, 7
        %s275 = scalar_select %p274, %s20, 7
        %s276 = smul.addr %s275, 8
        %s277 = scalar_lea.vmem %s3, %s276
        %p278 = scmp.lt.s32.totalorder %s20, 7
        %s279 = scalar_select %p278, %s20, 7
        %s280 = smul.addr %s279, 8
        %s281 = scalar_lea.vmem %s4, %s280
        %v282 = vld [vmem:[%s265] sm:$0xff]
        %v283 = vld [vmem:[%s269] sm:$0xff]
        %v284 = vld [vmem:[%s273] sm:$0xff]
        %v285 = vld [vmem:[%s277] sm:$0xff]
        %vm286 = vcmask 64512
        %v288 = vsel %vm286, %v282, 0
        %v291 = vsel %vm286, %v283, 0
        %293 = vmatprep.subr.mxu0 0.0
        %294 = vmatpush1.xpose.msra.mxu0 %v291
        %295 = vmatprep.subr.mxu0 0.0
        %296 = vmatpush1.xpose.msra.mxu0 0.0
        %297 = vmatprep.subr.mxu0 0.0
        %298 = vmatpush1.xpose.msra.mxu0 0.0
        %299 = vmatprep.subr.mxu0 0.0
        %300 = vmatpush1.xpose.msra.mxu0 0.0
        %301 = vmatprep.subr.mxu0 0.0
        %302 = vmatpush1.xpose.msra.mxu0 0.0
        %303 = vmatprep.subr.mxu0 0.0
        %304 = vmatpush1.xpose.msra.mxu0 0.0
        %305 = vmatprep.subr.mxu0 0.0
        %306 = vmatpush1.xpose.msra.mxu0 0.0
        %307 = vmatprep.subr.mxu0 0.0
        %308 = vmatpush1.xpose.msra.mxu0 0.0
        %309 = vmatprep.subr.mxu0 0.0
        %310 = vmatpush1.xpose.msra.mxu0 0.0
        %311 = vmatprep.subr.mxu0 0.0
        %312 = vmatpush1.xpose.msra.mxu0 0.0
        %313 = vmatprep.subr.mxu0 0.0
        %314 = vmatpush1.xpose.msra.mxu0 0.0
        %315 = vmatprep.subr.mxu0 0.0
        %316 = vmatpush1.xpose.msra.mxu0 0.0
        %317 = vmatprep.subr.mxu0 0.0
        %318 = vmatpush1.xpose.msra.mxu0 0.0
        %319 = vmatprep.subr.mxu0 0.0
        %320 = vmatpush1.xpose.msra.mxu0 0.0
        %321 = vmatprep.subr.mxu0 0.0
        %322 = vmatpush1.xpose.msra.mxu0 0.0
        %323 = vmatprep.subr.mxu0 0.0
        %324 = vmatpush1.xpose.msra.mxu0 0.0
        %325 = vmatprep.subr.mxu0 0.0
        %326 = vmatpush1.xpose.msra.mxu0 0.0
        %327 = vmatprep.subr.mxu0 0.0
        %328 = vmatpush1.xpose.msra.mxu0 0.0
        %329 = vmatprep.subr.mxu0 0.0
        %330 = vmatpush1.xpose.msra.mxu0 0.0
        %331 = vmatprep.subr.mxu0 0.0
        %332 = vmatpush1.xpose.msra.mxu0 0.0
        %333 = vmatprep.subr.mxu0 0.0
        %334 = vmatpush1.xpose.msra.mxu0 0.0
        %335 = vmatprep.subr.mxu0 0.0
        %336 = vmatpush1.xpose.msra.mxu0 0.0
        %337 = vmatprep.subr.mxu0 0.0
        %338 = vmatpush1.xpose.msra.mxu0 0.0
        %339 = vmatprep.subr.mxu0 0.0
        %340 = vmatpush1.xpose.msra.mxu0 0.0
        %341 = vmatprep.subr.mxu0 0.0
        %342 = vmatpush1.xpose.msra.mxu0 0.0
        %343 = vmatprep.subr.mxu0 0.0
        %344 = vmatpush1.xpose.msra.mxu0 0.0
        %345 = vmatprep.subr.mxu0 0.0
        %346 = vmatpush1.xpose.msra.mxu0 0.0
        %347 = vmatprep.subr.mxu0 0.0
        %348 = vmatpush1.xpose.msra.mxu0 0.0
        %349 = vmatprep.subr.mxu0 0.0
        %350 = vmatpush1.xpose.msra.mxu0 0.0
        %351 = vmatprep.subr.mxu0 0.0
        %352 = vmatpush1.xpose.msra.mxu0 0.0
        %353 = vmatprep.subr.mxu0 0.0
        %354 = vmatpush1.xpose.msra.mxu0 0.0
        %355 = vmatprep.subr.mxu0 0.0
        %356 = vmatpush1.xpose.msra.mxu0 0.0
        %357 = vmatprep.mubr.f32.mxu0 0.0
        %358 = vmatmul.mubr.f32.gmra.mrb[0].mxu0 %v288
        %v359 = vpop.f32.mrb[0].mxu0
        %v360 = vadd.f32 0.0, %v359
        %v361 = vpop.f32.mrb[0].mxu0
        %362 = vdwg.mxu0
        %v363 = vmul.f32 %v360, 0.35355338
        %vm364 = vcmp.eq.f32.partialorder %v285, 0.0
        %v365 = vsel %vm364, -1e+10, %v363
        %v366 = vsel %vm286, %v365, -inf
        %367 = vmax.xlane.f32.xlu0 %v366
        %v368 = vpop.xlane.xlu0 %367
        %v369 = vsub.f32 %v365, %v368
        %v370 = vmul.f32 %v369, 1.442695
        %v371 = vpow.pop %v370
        %v372 = vsel %vm286, %v371, 0.0
        %373 = vadd.xlane.f32.xlu0 %v372
        %v374 = vpop.xlane.xlu0 %373
        %v375 = vrcp.pop %v374
        %v376 = vmul.f32 %v371, %v375
        %v378 = vsel %vm286, %v376, 0
        %380 = vmatprep.subr.mxu0 0.0
        %381 = vmatpush1.msra.mxu0 %v284
        %382 = vmatprep.subr.mxu0 0.0
        %383 = vmatpush1.msra.mxu0 0.0
        %384 = vmatprep.subr.mxu0 0.0
        %385 = vmatpush1.msra.mxu0 0.0
        %386 = vmatprep.subr.mxu0 0.0
        %387 = vmatpush1.msra.mxu0 0.0
        %388 = vmatprep.subr.mxu0 0.0
        %389 = vmatpush1.msra.mxu0 0.0
        %390 = vmatprep.subr.mxu0 0.0
        %391 = vmatpush1.msra.mxu0 0.0
        %392 = vmatprep.subr.mxu0 0.0
        %393 = vmatpush1.msra.mxu0 0.0
        %394 = vmatprep.subr.mxu0 0.0
        %395 = vmatpush1.msra.mxu0 0.0
        %396 = vmatprep.subr.mxu0 0.0
        %397 = vmatpush1.msra.mxu0 0.0
        %398 = vmatprep.subr.mxu0 0.0
        %399 = vmatpush1.msra.mxu0 0.0
        %400 = vmatprep.subr.mxu0 0.0
        %401 = vmatpush1.msra.mxu0 0.0
        %402 = vmatprep.subr.mxu0 0.0
        %403 = vmatpush1.msra.mxu0 0.0
        %404 = vmatprep.subr.mxu0 0.0
        %405 = vmatpush1.msra.mxu0 0.0
        %406 = vmatprep.subr.mxu0 0.0
        %407 = vmatpush1.msra.mxu0 0.0
        %408 = vmatprep.subr.mxu0 0.0
        %409 = vmatpush1.msra.mxu0 0.0
        %410 = vmatprep.subr.mxu0 0.0
        %411 = vmatpush1.msra.mxu0 0.0
        %412 = vmatprep.subr.mxu0 0.0
        %413 = vmatpush1.msra.mxu0 0.0
        %414 = vmatprep.subr.mxu0 0.0
        %415 = vmatpush1.msra.mxu0 0.0
        %416 = vmatprep.subr.mxu0 0.0
        %417 = vmatpush1.msra.mxu0 0.0
        %418 = vmatprep.subr.mxu0 0.0
        %419 = vmatpush1.msra.mxu0 0.0
        %420 = vmatprep.subr.mxu0 0.0
        %421 = vmatpush1.msra.mxu0 0.0
        %422 = vmatprep.subr.mxu0 0.0
        %423 = vmatpush1.msra.mxu0 0.0
        %424 = vmatprep.subr.mxu0 0.0
        %425 = vmatpush1.msra.mxu0 0.0
        %426 = vmatprep.subr.mxu0 0.0
        %427 = vmatpush1.msra.mxu0 0.0
        %428 = vmatprep.subr.mxu0 0.0
        %429 = vmatpush1.msra.mxu0 0.0
        %430 = vmatprep.subr.mxu0 0.0
        %431 = vmatpush1.msra.mxu0 0.0
        %432 = vmatprep.subr.mxu0 0.0
        %433 = vmatpush1.msra.mxu0 0.0
        %434 = vmatprep.subr.mxu0 0.0
        %435 = vmatpush1.msra.mxu0 0.0
        %436 = vmatprep.subr.mxu0 0.0
        %437 = vmatpush1.msra.mxu0 0.0
        %438 = vmatprep.subr.mxu0 0.0
        %439 = vmatpush1.msra.mxu0 0.0
        %440 = vmatprep.subr.mxu0 0.0
        %441 = vmatpush1.msra.mxu0 0.0
        %442 = vmatprep.subr.mxu0 0.0
        %443 = vmatpush1.msra.mxu0 0.0
        %444 = vmatprep.mubr.f32.mxu0 0.0
        %445 = vmatmul.mubr.f32.gmra.mrb[0].mxu0 %v378
        %v446 = vpop.f32.mrb[0].mxu0
        %v447 = vadd.f32 0.0, %v446
        %v448 = vpop.f32.mrb[0].mxu0
        %449 = vdwg.mxu0
        %450 = vst.msk [vmem:[%s281] sm:$0xff] %vm286, %v447
        %451 = vst.msk [vmem:[%s261] sm:$0xff] %vm286, %v376
        %p452 = scmp.lt.s32.totalorder %s20, 7
        %s453 = scalar_select %p452, %s20, 7
        %s454 = smul.addr %s453, 8
        %s455 = scalar_lea.vmem %s4, %s454
        %s456 = sand.u32 %s158, 1
        %s457 = scalar_lea.sflag [#allocation3], %s456
        %s458 = sand.u32 %s158, 1
        %s459 = smul.addr %s458, 8
        %s460 = scalar_lea.vmem [#allocation2], %s459
        // Predicated region
        $region37: #{transformer_decoder_layer.17} parent=35 // pred_check
          %p461 = pneg %p142
        $region38: #{transformer_decoder_layer.17} parent=35 // pred_check_branch
          %463 = sbr.rel (%p461) target = $region40
        $region39: #{transformer_decoder_layer.17} parent=35 // pred_region
          _
        $region40: #{transformer_decoder_layer.17} parent=35 // pred_fallthru
          _
        // Predicated region
        $region41: #{transformer_decoder_layer.17} parent=35 // pred_check
          %p464 = pneg %p168
        $region42: #{transformer_decoder_layer.17} parent=35 // pred_check_branch
          %466 = sbr.rel (%p464) target = $region44
        $region43: #{transformer_decoder_layer.17} parent=35 // pred_region
          %s468 = ssub.s32 128, 128
          %469 = vsyncadd %s457, %s468
          %s470 = smul.addr %s20, 128
          %s471 = scalar_lea.hbm %s5, %s470
          %s473 = sshll.u32 %s460, 4
          %s474 = int_to_ptr.vmem [resolvable:$true] %s473
          %476 = dma.vmem_to_hbm [thread:$0]  %s474, 128, %s471, %s457
        $region44: #{transformer_decoder_layer.17} parent=35 // pred_fallthru
          _
      $region36: #{transformer_decoder_layer.17} parent=5 // pred_fallthru
        _
      %p477 = scmp.le.s32.totalorder 2, %s15
      // Predicated region
      $region45: #{transformer_decoder_layer.17} parent=5 // pred_check
        %p478 = pneg %p477
      $region46: #{transformer_decoder_layer.17} parent=5 // pred_check_branch
        %480 = sbr.rel (%p478) target = $region48
      $region47: #{transformer_decoder_layer.17} parent=5 // pred_region
        %s481 = ssub.s32 %s15, 2
        // Predicated region
        $region49: #{transformer_decoder_layer.17} parent=47 // pred_check
          %p482 = pneg %p148
        $region50: #{transformer_decoder_layer.17} parent=47 // pred_check_branch
          %484 = sbr.rel (%p482) target = $region52
        $region51: #{transformer_decoder_layer.17} parent=47 // pred_region
          %p485 = scmp.lt.s32.totalorder %s21, 7
          %s486 = scalar_select %p485, %s21, 7
          %s487 = smul.addr %s486, 8
          %s488 = scalar_lea.vmem %s4, %s487
        $region52: #{transformer_decoder_layer.17} parent=47 // pred_fallthru
          _
        // Predicated region
        $region53: #{transformer_decoder_layer.17} parent=47 // pred_check
          %p489 = pneg %p174
        $region54: #{transformer_decoder_layer.17} parent=47 // pred_check_branch
          %491 = sbr.rel (%p489) target = $region56
        $region55: #{transformer_decoder_layer.17} parent=47 // pred_region
          %s492 = sand.u32 %s159, 1
          %s493 = scalar_lea.sflag [#allocation3], %s492
          %s494 = sand.u32 %s159, 1
          %s495 = smul.addr %s494, 8
          %s496 = scalar_lea.vmem [#allocation2], %s495
          %497 = dma.done %s493, 128
        $region56: #{transformer_decoder_layer.17} parent=47 // pred_fallthru
          _
      $region48: #{transformer_decoder_layer.17} parent=5 // pred_fallthru
        _
    $region6: #{transformer_decoder_layer.17} parent=1 // loop_footer
      %s19 = sadd.s32 1, %s15
    $region7: #{transformer_decoder_layer.17} parent=1 // loop_footer_branch
      %14 = sbr.rel target = $region3
    $region8: #{transformer_decoder_layer.17} parent=1 // loop_exit
      _
    %498 = vsyncpa [#allocation3], 1
    %s499 = scalar_lea.sflag [#allocation3], 1
    %500 = vsyncpa %s499, 1

// kernel: transformer_decoder_layer.27
$region0: #{transformer_decoder_layer.27}
  #allocation0 [shape = 'u32[]', space=smem, size = 0x4, offset = 0x4, fixed_abs, tag = 'smem constant byte address 0x4 - core index']
  #allocation1 [shape = 'u32[144,128]{1,0:T(1,128)}', space=vmem, size = 0x12000, scoped, tag = 'internal scratch']
  %s0 = inlined_call_operand.vmem [shape: f32[16,32], index: 0, kind: input, shape index: {}]
  %s1 = inlined_call_operand.vmem [shape: f32[16,32], index: 1, kind: input, shape index: {}]
  %s2 = inlined_call_operand.vmem [shape: f32[1,32], index: 2, kind: input, shape index: {}]
  %s3 = inlined_call_operand.vmem [shape: f32[1,32], index: 3, kind: input, shape index: {}]
  %s4 = inlined_call_operand.hbm [shape: f32[16,32], index: 4, kind: output, shape index: {}]
  %s5 = sld [smem:[#allocation0]]
  $region26: #{transformer_decoder_layer.27} parent=0
    _
  %s7 = ssub.s32 1, %s5
  %s8 = scalar_select 0, %s7, %s5
  $region1: #{transformer_decoder_layer.27} parent=0
    #allocation2 [shape = 'u8[8192]{0}', space=vmem, size = 0x2000, scoped, tag = 'output window, operand 0, single buffered']
    #allocation3 [shape = 's32[1]{0}', space=sflag, size = 0x4, scoped, tag = 'scoped memory for transformer_decoder_layer.27']
    %9 = vsyncpa [#allocation3], 0
    // Predicated region
    $region2: #{transformer_decoder_layer.27} parent=1 // pred_check
      _
    $region3: #{transformer_decoder_layer.27} parent=1 // pred_check_branch
      %11 = sbr.rel (0) target = $region5
    $region4: #{transformer_decoder_layer.27} parent=1 // pred_region
      _
    $region5: #{transformer_decoder_layer.27} parent=1 // pred_fallthru
      _
    // Predicated region
    $region6: #{transformer_decoder_layer.27} parent=1 // pred_check
      _
    $region7: #{transformer_decoder_layer.27} parent=1 // pred_check_branch
      %13 = sbr.rel (0) target = $region9
    $region8: #{transformer_decoder_layer.27} parent=1 // pred_region
      _
    $region9: #{transformer_decoder_layer.27} parent=1 // pred_fallthru
      _
    // Predicated region
    $region10: #{transformer_decoder_layer.27} parent=1 // pred_check
      _
    $region11: #{transformer_decoder_layer.27} parent=1 // pred_check_branch
      %15 = sbr.rel (0) target = $region13
    $region12: #{transformer_decoder_layer.27} parent=1 // pred_region
      _
    $region13: #{transformer_decoder_layer.27} parent=1 // pred_fallthru
      _
    // Predicated region
    $region14: #{transformer_decoder_layer.27} parent=1 // pred_check
      _
    $region15: #{transformer_decoder_layer.27} parent=1 // pred_check_branch
      %17 = sbr.rel (0) target = $region17
    $region16: #{transformer_decoder_layer.27} parent=1 // pred_region
      _
    $region17: #{transformer_decoder_layer.27} parent=1 // pred_fallthru
      _
    %v18 = vld [vmem:[%s0] sm:$0xff]
    %v19 = vld [vmem:[%s0 + $0x8] sm:$0xff]
    %v20 = vld [vmem:[%s1] sm:$0xff]
    %v21 = vld [vmem:[%s1 + $0x8] sm:$0xff]
    %v22 = vadd.f32 %v18, %v20
    %v23 = vadd.f32 %v19, %v21
    %vm24 = vcmask 261120
    %v25 = vsel %vm24, %v22, 0.0
    %26 = vadd.xlane.f32.xlu0 %v25
    %v27 = vpop.xlane.xlu0 %26
    %v28 = vsel %vm24, %v23, 0.0
    %29 = vadd.xlane.f32.xlu0 %v28
    %v30 = vpop.xlane.xlu0 %29
    %v31 = vrcp.pop 32.0
    %v32 = vmul.f32 %v27, %v31
    %v33 = vmul.f32 %v30, %v31
    %v34 = vsub.f32 %v22, %v32
    %v35 = vsub.f32 %v23, %v33
    %v36 = vmul.f32 %v34, %v34
    %v37 = vmul.f32 %v35, %v35
    %v38 = vsel %vm24, %v36, 0.0
    %39 = vadd.xlane.f32.xlu0 %v38
    %v40 = vpop.xlane.xlu0 %39
    %v41 = vsel %vm24, %v37, 0.0
    %42 = vadd.xlane.f32.xlu0 %v41
    %v43 = vpop.xlane.xlu0 %42
    %v44 = vmul.f32 %v40, %v31
    %v45 = vmul.f32 %v43, %v31
    %v46 = vadd.f32 %v44, 1e-05
    %v47 = vadd.f32 %v45, 1e-05
    %v48 = vrsqrt.pop %v46
    %v49 = vrsqrt.pop %v47
    %v50 = vmul.f32 %v34, %v48
    %v51 = vmul.f32 %v35, %v49
    %v52 = vld [vmem:[%s2] sm:$0x1]
    %v54 = vlaneseq
    %v55 = vshrl.u32 %v54, 7
    %v56 = vsub.s32 0, %v55
    %v57 = vrot.slane %v52, %v56
    %v59 = vmul.f32 %v50, %v57
    %v60 = vmul.f32 %v51, %v57
    %v61 = vld [vmem:[%s3] sm:$0x1]
    %v63 = vlaneseq
    %v64 = vshrl.u32 %v63, 7
    %v65 = vsub.s32 0, %v64
    %v66 = vrot.slane %v61, %v65
    %v68 = vadd.f32 %v59, %v66
    %v69 = vadd.f32 %v60, %v66
    %70 = vst.msk [vmem:[#allocation2] sm:$0xff] %vm24, %v68
    %71 = vst.msk [vmem:[#allocation2 + $0x8] sm:$0xff] %vm24, %v69
    // Predicated region
    $region18: #{transformer_decoder_layer.27} parent=1 // pred_check
      _
    $region19: #{transformer_decoder_layer.27} parent=1 // pred_check_branch
      %73 = sbr.rel (0) target = $region21
    $region20: #{transformer_decoder_layer.27} parent=1 // pred_region
      %s75 = ssub.s32 256, 256
      %76 = vsyncadd [#allocation3], %s75
      %s77 = sshll.u32 [#allocation2], 4
      %s78 = int_to_ptr.vmem [resolvable:$true] %s77
      %83 = dma.vmem_to_hbm [thread:$0]  %s78, 256, %s4, [#allocation3], 128, 128, 8
    $region21: #{transformer_decoder_layer.27} parent=1 // pred_fallthru
      _
    // Predicated region
    $region22: #{transformer_decoder_layer.27} parent=1 // pred_check
      _
    $region23: #{transformer_decoder_layer.27} parent=1 // pred_check_branch
      %85 = sbr.rel (0) target = $region25
    $region24: #{transformer_decoder_layer.27} parent=1 // pred_region
      %86 = dma.done [#allocation3], 256
    $region25: #{transformer_decoder_layer.27} parent=1 // pred_fallthru
      _
    %87 = vsyncpa [#allocation3], 1

// kernel: transformer_decoder_layer.26
$region0: #{transformer_decoder_layer.26}
  #allocation0 [shape = 'u32[]', space=smem, size = 0x4, offset = 0x4, fixed_abs, tag = 'smem constant byte address 0x4 - core index']
  #allocation1 [shape = 'u32[144,128]{1,0:T(1,128)}', space=vmem, size = 0x12000, scoped, tag = 'internal scratch']
  %s0 = inlined_call_operand.vmem [shape: f32[16,32], index: 0, kind: input, shape index: {}]
  %s1 = inlined_call_operand.vmem [shape: f32[32,64], index: 1, kind: input, shape index: {}]
  %s2 = inlined_call_operand.vmem [shape: f32[1,64], index: 2, kind: input, shape index: {}]
  %s3 = inlined_call_operand.vmem [shape: f32[64,32], index: 3, kind: input, shape index: {}]
  %s4 = inlined_call_operand.vmem [shape: f32[1,32], index: 4, kind: input, shape index: {}]
  %s5 = inlined_call_operand.vmem [shape: f32[16,32], index: 5, kind: output, shape index: {}]
  %s6 = sld [smem:[#allocation0]]
  $region30: #{transformer_decoder_layer.26} parent=0
    _
  %s8 = ssub.s32 1, %s6
  %s9 = scalar_select 0, %s8, %s6
  // Predicated region
  $region2: #{transformer_decoder_layer.26} parent=0 // pred_check
    _
  $region3: #{transformer_decoder_layer.26} parent=0 // pred_check_branch
    %11 = sbr.rel (0) target = $region5
  $region4: #{transformer_decoder_layer.26} parent=0 // pred_region
    _
  $region5: #{transformer_decoder_layer.26} parent=0 // pred_fallthru
    _
  // Predicated region
  $region6: #{transformer_decoder_layer.26} parent=0 // pred_check
    _
  $region7: #{transformer_decoder_layer.26} parent=0 // pred_check_branch
    %13 = sbr.rel (0) target = $region9
  $region8: #{transformer_decoder_layer.26} parent=0 // pred_region
    _
  $region9: #{transformer_decoder_layer.26} parent=0 // pred_fallthru
    _
  // Predicated region
  $region10: #{transformer_decoder_layer.26} parent=0 // pred_check
    _
  $region11: #{transformer_decoder_layer.26} parent=0 // pred_check_branch
    %15 = sbr.rel (0) target = $region13
  $region12: #{transformer_decoder_layer.26} parent=0 // pred_region
    _
  $region13: #{transformer_decoder_layer.26} parent=0 // pred_fallthru
    _
  // Predicated region
  $region14: #{transformer_decoder_layer.26} parent=0 // pred_check
    _
  $region15: #{transformer_decoder_layer.26} parent=0 // pred_check_branch
    %17 = sbr.rel (0) target = $region17
  $region16: #{transformer_decoder_layer.26} parent=0 // pred_region
    _
  $region17: #{transformer_decoder_layer.26} parent=0 // pred_fallthru
    _
  // Predicated region
  $region18: #{transformer_decoder_layer.26} parent=0 // pred_check
    _
  $region19: #{transformer_decoder_layer.26} parent=0 // pred_check_branch
    %19 = sbr.rel (0) target = $region21
  $region20: #{transformer_decoder_layer.26} parent=0 // pred_region
    _
  $region21: #{transformer_decoder_layer.26} parent=0 // pred_fallthru
    _
  %v20 = vld [vmem:[%s0] sm:$0xff]
  %v21 = vld [vmem:[%s0 + $0x8] sm:$0xff]
  %v22 = vld [vmem:[%s1] sm:$0xff]
  %v23 = vld [vmem:[%s1 + $0x8] sm:$0xff]
  %v24 = vld [vmem:[%s1 + $0x10] sm:$0xff]
  %v25 = vld [vmem:[%s1 + $0x18] sm:$0xff]
  %v26 = vld [vmem:[%s2] sm:$0x1]
  %v28 = vlaneseq
  %v29 = vshrl.u32 %v28, 7
  %v30 = vsub.s32 0, %v29
  %v31 = vrot.slane %v26, %v30
  %vm33 = vcmask 261120
  %v35 = vsel %vm33, %v20, 0
  %v38 = vsel %vm33, %v21, 0
  %40 = vmatprep.subr.mxu0 0.0
  %41 = vmatpush1.msra.mxu0 %v22
  %42 = vmatprep.subr.mxu0 0.0
  %43 = vmatpush1.msra.mxu0 %v23
  %44 = vmatprep.subr.mxu0 0.0
  %45 = vmatpush1.msra.mxu0 %v24
  %46 = vmatprep.subr.mxu0 0.0
  %47 = vmatpush1.msra.mxu0 %v25
  %48 = vmatprep.subr.mxu0 0.0
  %49 = vmatpush1.msra.mxu0 0.0
  %50 = vmatprep.subr.mxu0 0.0
  %51 = vmatpush1.msra.mxu0 0.0
  %52 = vmatprep.subr.mxu0 0.0
  %53 = vmatpush1.msra.mxu0 0.0
  %54 = vmatprep.subr.mxu0 0.0
  %55 = vmatpush1.msra.mxu0 0.0
  %56 = vmatprep.subr.mxu0 0.0
  %57 = vmatpush1.msra.mxu0 0.0
  %58 = vmatprep.subr.mxu0 0.0
  %59 = vmatpush1.msra.mxu0 0.0
  %60 = vmatprep.subr.mxu0 0.0
  %61 = vmatpush1.msra.mxu0 0.0
  %62 = vmatprep.subr.mxu0 0.0
  %63 = vmatpush1.msra.mxu0 0.0
  %64 = vmatprep.subr.mxu0 0.0
  %65 = vmatpush1.msra.mxu0 0.0
  %66 = vmatprep.subr.mxu0 0.0
  %67 = vmatpush1.msra.mxu0 0.0
  %68 = vmatprep.subr.mxu0 0.0
  %69 = vmatpush1.msra.mxu0 0.0
  %70 = vmatprep.subr.mxu0 0.0
  %71 = vmatpush1.msra.mxu0 0.0
  %72 = vmatprep.subr.mxu0 0.0
  %73 = vmatpush1.msra.mxu0 0.0
  %74 = vmatprep.subr.mxu0 0.0
  %75 = vmatpush1.msra.mxu0 0.0
  %76 = vmatprep.subr.mxu0 0.0
  %77 = vmatpush1.msra.mxu0 0.0
  %78 = vmatprep.subr.mxu0 0.0
  %79 = vmatpush1.msra.mxu0 0.0
  %80 = vmatprep.subr.mxu0 0.0
  %81 = vmatpush1.msra.mxu0 0.0
  %82 = vmatprep.subr.mxu0 0.0
  %83 = vmatpush1.msra.mxu0 0.0
  %84 = vmatprep.subr.mxu0 0.0
  %85 = vmatpush1.msra.mxu0 0.0
  %86 = vmatprep.subr.mxu0 0.0
  %87 = vmatpush1.msra.mxu0 0.0
  %88 = vmatprep.subr.mxu0 0.0
  %89 = vmatpush1.msra.mxu0 0.0
  %90 = vmatprep.subr.mxu0 0.0
  %91 = vmatpush1.msra.mxu0 0.0
  %92 = vmatprep.subr.mxu0 0.0
  %93 = vmatpush1.msra.mxu0 0.0
  %94 = vmatprep.subr.mxu0 0.0
  %95 = vmatpush1.msra.mxu0 0.0
  %96 = vmatprep.subr.mxu0 0.0
  %97 = vmatpush1.msra.mxu0 0.0
  %98 = vmatprep.subr.mxu0 0.0
  %99 = vmatpush1.msra.mxu0 0.0
  %100 = vmatprep.subr.mxu0 0.0
  %101 = vmatpush1.msra.mxu0 0.0
  %102 = vmatprep.subr.mxu0 0.0
  %103 = vmatpush1.msra.mxu0 0.0
  %104 = vmatprep.mubr.f32.mxu0 0.0
  %105 = vmatmul.mubr.f32.gmra.mrb[0].mxu0 %v35
  %v106 = vpop.f32.mrb[0].mxu0
  %v107 = vadd.f32 %v31, %v106
  %v108 = vpop.f32.mrb[0].mxu0
  %109 = vmatprep.mubr.f32.mxu0 0.0
  %110 = vmatmul.mubr.f32.gmra.mrb[0].mxu0 %v38
  %v111 = vpop.f32.mrb[0].mxu0
  %v112 = vadd.f32 %v31, %v111
  %v113 = vpop.f32.mrb[0].mxu0
  %114 = vdwg.mxu0
  %v115 = vmax.f32 %v107, 0.0
  %v116 = vmax.f32 %v112, 0.0
  %v117 = vld [vmem:[%s3] sm:$0xff]
  %v118 = vld [vmem:[%s3 + $0x8] sm:$0xff]
  %v119 = vld [vmem:[%s3 + $0x10] sm:$0xff]
  %v120 = vld [vmem:[%s3 + $0x18] sm:$0xff]
  %v121 = vld [vmem:[%s3 + $0x20] sm:$0xff]
  %v122 = vld [vmem:[%s3 + $0x28] sm:$0xff]
  %v123 = vld [vmem:[%s3 + $0x30] sm:$0xff]
  %v124 = vld [vmem:[%s3 + $0x38] sm:$0xff]
  %v125 = vld [vmem:[%s4] sm:$0x1]
  %v127 = vlaneseq
  %v128 = vshrl.u32 %v127, 7
  %v129 = vsub.s32 0, %v128
  %v130 = vrot.slane %v125, %v129
  %vm132 = vcmask 523264
  %v134 = vsel %vm132, %v115, 0
  %v137 = vsel %vm132, %v116, 0
  %139 = vmatprep.subr.mxu0 0.0
  %140 = vmatpush1.msra.mxu0 %v117
  %141 = vmatprep.subr.mxu0 0.0
  %142 = vmatpush1.msra.mxu0 %v118
  %143 = vmatprep.subr.mxu0 0.0
  %144 = vmatpush1.msra.mxu0 %v119
  %145 = vmatprep.subr.mxu0 0.0
  %146 = vmatpush1.msra.mxu0 %v120
  %147 = vmatprep.subr.mxu0 0.0
  %148 = vmatpush1.msra.mxu0 %v121
  %149 = vmatprep.subr.mxu0 0.0
  %150 = vmatpush1.msra.mxu0 %v122
  %151 = vmatprep.subr.mxu0 0.0
  %152 = vmatpush1.msra.mxu0 %v123
  %153 = vmatprep.subr.mxu0 0.0
  %154 = vmatpush1.msra.mxu0 %v124
  %155 = vmatprep.subr.mxu0 0.0
  %156 = vmatpush1.msra.mxu0 0.0
  %157 = vmatprep.subr.mxu0 0.0
  %158 = vmatpush1.msra.mxu0 0.0
  %159 = vmatprep.subr.mxu0 0.0
  %160 = vmatpush1.msra.mxu0 0.0
  %161 = vmatprep.subr.mxu0 0.0
  %162 = vmatpush1.msra.mxu0 0.0
  %163 = vmatprep.subr.mxu0 0.0
  %164 = vmatpush1.msra.mxu0 0.0
  %165 = vmatprep.subr.mxu0 0.0
  %166 = vmatpush1.msra.mxu0 0.0
  %167 = vmatprep.subr.mxu0 0.0
  %168 = vmatpush1.msra.mxu0 0.0
  %169 = vmatprep.subr.mxu0 0.0
  %170 = vmatpush1.msra.mxu0 0.0
  %171 = vmatprep.subr.mxu0 0.0
  %172 = vmatpush1.msra.mxu0 0.0
  %173 = vmatprep.subr.mxu0 0.0
  %174 = vmatpush1.msra.mxu0 0.0
  %175 = vmatprep.subr.mxu0 0.0
  %176 = vmatpush1.msra.mxu0 0.0
  %177 = vmatprep.subr.mxu0 0.0
  %178 = vmatpush1.msra.mxu0 0.0
  %179 = vmatprep.subr.mxu0 0.0
  %180 = vmatpush1.msra.mxu0 0.0
  %181 = vmatprep.subr.mxu0 0.0
  %182 = vmatpush1.msra.mxu0 0.0
  %183 = vmatprep.subr.mxu0 0.0
  %184 = vmatpush1.msra.mxu0 0.0
  %185 = vmatprep.subr.mxu0 0.0
  %186 = vmatpush1.msra.mxu0 0.0
  %187 = vmatprep.subr.mxu0 0.0
  %188 = vmatpush1.msra.mxu0 0.0
  %189 = vmatprep.subr.mxu0 0.0
  %190 = vmatpush1.msra.mxu0 0.0
  %191 = vmatprep.subr.mxu0 0.0
  %192 = vmatpush1.msra.mxu0 0.0
  %193 = vmatprep.subr.mxu0 0.0
  %194 = vmatpush1.msra.mxu0 0.0
  %195 = vmatprep.subr.mxu0 0.0
  %196 = vmatpush1.msra.mxu0 0.0
  %197 = vmatprep.subr.mxu0 0.0
  %198 = vmatpush1.msra.mxu0 0.0
  %199 = vmatprep.subr.mxu0 0.0
  %200 = vmatpush1.msra.mxu0 0.0
  %201 = vmatprep.subr.mxu0 0.0
  %202 = vmatpush1.msra.mxu0 0.0
  %203 = vmatprep.mubr.f32.mxu0 0.0
  %204 = vmatmul.mubr.f32.gmra.mrb[0].mxu0 %v134
  %v205 = vpop.f32.mrb[0].mxu0
  %v206 = vadd.f32 %v130, %v205
  %v207 = vpop.f32.mrb[0].mxu0
  %208 = vmatprep.mubr.f32.mxu0 0.0
  %209 = vmatmul.mubr.f32.gmra.mrb[0].mxu0 %v137
  %v210 = vpop.f32.mrb[0].mxu0
  %v211 = vadd.f32 %v130, %v210
  %v212 = vpop.f32.mrb[0].mxu0
  %213 = vdwg.mxu0
  %214 = vst.msk [vmem:[%s5] sm:$0xff] %vm33, %v206
  %215 = vst.msk [vmem:[%s5 + $0x8] sm:$0xff] %vm33, %v211
  // Predicated region
  $region22: #{transformer_decoder_layer.26} parent=0 // pred_check
    _
  $region23: #{transformer_decoder_layer.26} parent=0 // pred_check_branch
    %217 = sbr.rel (0) target = $region25
  $region24: #{transformer_decoder_layer.26} parent=0 // pred_region
    _
  $region25: #{transformer_decoder_layer.26} parent=0 // pred_fallthru
    _
  // Predicated region
  $region26: #{transformer_decoder_layer.26} parent=0 // pred_check
    _
  $region27: #{transformer_decoder_layer.26} parent=0 // pred_check_branch
    %219 = sbr.rel (0) target = $region29
  $region28: #{transformer_decoder_layer.26} parent=0 // pred_region
    _
  $region29: #{transformer_decoder_layer.26} parent=0 // pred_fallthru
    _

// kernel: transformer_decoder_layer.23
$region0: #{transformer_decoder_layer.23}
  #allocation0 [shape = 'u32[]', space=smem, size = 0x4, offset = 0x4, fixed_abs, tag = 'smem constant byte address 0x4 - core index']
  #allocation1 [shape = 'u32[144,128]{1,0:T(1,128)}', space=vmem, size = 0x12000, scoped, tag = 'internal scratch']
  %s0 = inlined_call_operand.vmem [shape: f32[8,8,8], index: 0, kind: input, shape index: {}]
  %s1 = inlined_call_operand.vmem [shape: f32[8,16,8], index: 1, kind: input, shape index: {}]
  %s2 = inlined_call_operand.vmem [shape: f32[8,16,8], index: 2, kind: input, shape index: {}]
  %s3 = inlined_call_operand.vmem [shape: f32[8,8,16], index: 3, kind: input, shape index: {}]
  %s4 = inlined_call_operand.vmem [shape: f32[8,8,8], index: 4, kind: output, shape index: {0}]
  %s5 = inlined_call_operand.hbm [shape: f32[8,8,16], index: 5, kind: output, shape index: {1}]
  %6 = xla_tuple %s4, %s5
  %s7 = sld [smem:[#allocation0]]
  $region57: #{transformer_decoder_layer.23} parent=0
    _
  %s9 = ssub.s32 1, %s7
  %s10 = scalar_select 0, %s9, %s7
  $region1: #{transformer_decoder_layer.23} parent=0
    #allocation2 [shape = 'u8[8192]{0}', space=vmem, size = 0x2000, scoped, tag = 'output window, operand 1']
    #allocation3 [shape = 's32[2]{0}', space=sflag, size = 0x8, scoped, tag = 'scoped memory for transformer_decoder_layer.23']
    %11 = vsyncpa [#allocation3], 0
    %s12 = scalar_lea.sflag [#allocation3], 1
    %13 = vsyncpa %s12, 0
    loop: start=0, step=1, limit=10
    $region2: #{transformer_decoder_layer.23} parent=1 // loop_pre_header
      _
    $region3: #{transformer_decoder_layer.23} parent=1 // loop_header
      %s15 = sphi 0, %s19
      %p16 = scmp.ge.s32.totalorder %s15, 10
      %s25 = sphi 0, %s27
      %s28 = sphi 0, %s25
      %s29 = sphi 0, %s28
      %s45 = sphi 0, %s29
      %s51 = sphi 0, %s53
      %s54 = sphi 0, %s51
      %s55 = sphi 0, %s54
      %s71 = sphi 0, %s55
      %s77 = sphi 0, %s79
      %s80 = sphi 0, %s77
      %s81 = sphi 0, %s80
      %s97 = sphi 0, %s81
      %s103 = sphi 0, %s105
      %s106 = sphi 0, %s103
      %s107 = sphi 0, %s106
      %s123 = sphi 0, %s107
      %s129 = sphi 0, %s131
      %s132 = sphi 0, %s129
      %s133 = sphi 0, %s132
      %s149 = sphi 0, %s133
      %s155 = sphi 0, %s157
      %s158 = sphi 0, %s155
      %s159 = sphi 0, %s158
      %s175 = sphi 0, %s159
    $region4: #{transformer_decoder_layer.23} parent=1 // loop_header_branch
      %18 = sbr.rel (%p16) target = $region8
    $region5: #{transformer_decoder_layer.23} parent=1 // loop_body
      %s20 = ssub.s32 %s15, 1
      %s21 = ssub.s32 %s15, 2
      %s22 = sadd.s32 %s15, 1
      %s23 = ssub.s32 %s15, %s22
      %p24 = scmp.eq.s32.totalorder %s23, 0
      %s26 = sadd.s32 %s25, 1
      %s27 = scalar_select %p24, %s25, %s26
      %p30 = pneg %p24
      %p31 = scmp.eq.s32.totalorder %s15, 7
      %p32 = por %p30, %p31
      %p33 = scmp.ne.s32.totalorder %s25, %s28
      %p34 = scmp.eq.s32.totalorder %s15, 0
      %p35 = por %p33, %p34
      %p36 = scmp.ne.s32.totalorder %s25, %s28
      %p37 = scmp.eq.s32.totalorder %s20, 7
      %p38 = por %p36, %p37
      %p39 = scmp.ne.s32.totalorder %s28, %s29
      %p40 = scmp.eq.s32.totalorder %s20, 0
      %p41 = por %p39, %p40
      %p42 = scmp.ne.s32.totalorder %s28, %s29
      %p43 = scmp.eq.s32.totalorder %s21, 7
      %p44 = por %p42, %p43
      %p46 = scmp.ne.s32.totalorder %s29, %s45
      %p47 = scmp.eq.s32.totalorder %s21, 0
      %p48 = por %p46, %p47
      %s49 = ssub.s32 %s15, %s22
      %p50 = scmp.eq.s32.totalorder %s49, 0
      %s52 = sadd.s32 %s51, 1
      %s53 = scalar_select %p50, %s51, %s52
      %p56 = pneg %p50
      %p57 = scmp.eq.s32.totalorder %s15, 7
      %p58 = por %p56, %p57
      %p59 = scmp.ne.s32.totalorder %s51, %s54
      %p60 = scmp.eq.s32.totalorder %s15, 0
      %p61 = por %p59, %p60
      %p62 = scmp.ne.s32.totalorder %s51, %s54
      %p63 = scmp.eq.s32.totalorder %s20, 7
      %p64 = por %p62, %p63
      %p65 = scmp.ne.s32.totalorder %s54, %s55
      %p66 = scmp.eq.s32.totalorder %s20, 0
      %p67 = por %p65, %p66
      %p68 = scmp.ne.s32.totalorder %s54, %s55
      %p69 = scmp.eq.s32.totalorder %s21, 7
      %p70 = por %p68, %p69
      %p72 = scmp.ne.s32.totalorder %s55, %s71
      %p73 = scmp.eq.s32.totalorder %s21, 0
      %p74 = por %p72, %p73
      %s75 = ssub.s32 %s15, %s22
      %p76 = scmp.eq.s32.totalorder %s75, 0
      %s78 = sadd.s32 %s77, 1
      %s79 = scalar_select %p76, %s77, %s78
      %p82 = pneg %p76
      %p83 = scmp.eq.s32.totalorder %s15, 7
      %p84 = por %p82, %p83
      %p85 = scmp.ne.s32.totalorder %s77, %s80
      %p86 = scmp.eq.s32.totalorder %s15, 0
      %p87 = por %p85, %p86
      %p88 = scmp.ne.s32.totalorder %s77, %s80
      %p89 = scmp.eq.s32.totalorder %s20, 7
      %p90 = por %p88, %p89
      %p91 = scmp.ne.s32.totalorder %s80, %s81
      %p92 = scmp.eq.s32.totalorder %s20, 0
      %p93 = por %p91, %p92
      %p94 = scmp.ne.s32.totalorder %s80, %s81
      %p95 = scmp.eq.s32.totalorder %s21, 7
      %p96 = por %p94, %p95
      %p98 = scmp.ne.s32.totalorder %s81, %s97
      %p99 = scmp.eq.s32.totalorder %s21, 0
      %p100 = por %p98, %p99
      %s101 = ssub.s32 %s15, %s22
      %p102 = scmp.eq.s32.totalorder %s101, 0
      %s104 = sadd.s32 %s103, 1
      %s105 = scalar_select %p102, %s103, %s104
      %p108 = pneg %p102
      %p109 = scmp.eq.s32.totalorder %s15, 7
      %p110 = por %p108, %p109
      %p111 = scmp.ne.s32.totalorder %s103, %s106
      %p112 = scmp.eq.s32.totalorder %s15, 0
      %p113 = por %p111, %p112
      %p114 = scmp.ne.s32.totalorder %s103, %s106
      %p115 = scmp.eq.s32.totalorder %s20, 7
      %p116 = por %p114, %p115
      %p117 = scmp.ne.s32.totalorder %s106, %s107
      %p118 = scmp.eq.s32.totalorder %s20, 0
      %p119 = por %p117, %p118
      %p120 = scmp.ne.s32.totalorder %s106, %s107
      %p121 = scmp.eq.s32.totalorder %s21, 7
      %p122 = por %p120, %p121
      %p124 = scmp.ne.s32.totalorder %s107, %s123
      %p125 = scmp.eq.s32.totalorder %s21, 0
      %p126 = por %p124, %p125
      %s127 = ssub.s32 %s15, %s22
      %p128 = scmp.eq.s32.totalorder %s127, 0
      %s130 = sadd.s32 %s129, 1
      %s131 = scalar_select %p128, %s129, %s130
      %p134 = pneg %p128
      %p135 = scmp.eq.s32.totalorder %s15, 7
      %p136 = por %p134, %p135
      %p137 = scmp.ne.s32.totalorder %s129, %s132
      %p138 = scmp.eq.s32.totalorder %s15, 0
      %p139 = por %p137, %p138
      %p140 = scmp.ne.s32.totalorder %s129, %s132
      %p141 = scmp.eq.s32.totalorder %s20, 7
      %p142 = por %p140, %p141
      %p143 = scmp.ne.s32.totalorder %s132, %s133
      %p144 = scmp.eq.s32.totalorder %s20, 0
      %p145 = por %p143, %p144
      %p146 = scmp.ne.s32.totalorder %s132, %s133
      %p147 = scmp.eq.s32.totalorder %s21, 7
      %p148 = por %p146, %p147
      %p150 = scmp.ne.s32.totalorder %s133, %s149
      %p151 = scmp.eq.s32.totalorder %s21, 0
      %p152 = por %p150, %p151
      %s153 = ssub.s32 %s15, %s22
      %p154 = scmp.eq.s32.totalorder %s153, 0
      %s156 = sadd.s32 %s155, 1
      %s157 = scalar_select %p154, %s155, %s156
      %p160 = pneg %p154
      %p161 = scmp.eq.s32.totalorder %s15, 7
      %p162 = por %p160, %p161
      %p163 = scmp.ne.s32.totalorder %s155, %s158
      %p164 = scmp.eq.s32.totalorder %s15, 0
      %p165 = por %p163, %p164
      %p166 = scmp.ne.s32.totalorder %s155, %s158
      %p167 = scmp.eq.s32.totalorder %s20, 7
      %p168 = por %p166, %p167
      %p169 = scmp.ne.s32.totalorder %s158, %s159
      %p170 = scmp.eq.s32.totalorder %s20, 0
      %p171 = por %p169, %p170
      %p172 = scmp.ne.s32.totalorder %s158, %s159
      %p173 = scmp.eq.s32.totalorder %s21, 7
      %p174 = por %p172, %p173
      %p176 = scmp.ne.s32.totalorder %s159, %s175
      %p177 = scmp.eq.s32.totalorder %s21, 0
      %p178 = por %p176, %p177
      %p179 = scmp.le.s32.totalorder 1, %s15
      %p180 = scmp.lt.s32.totalorder %s15, 9
      %p181 = pnand %p179, %p180
      %p182 = pneg %p181
      // Predicated region
      $region9: #{transformer_decoder_layer.23} parent=5 // pred_check
        _
      $region10: #{transformer_decoder_layer.23} parent=5 // pred_check_branch
        %184 = sbr.rel (%p181) target = $region12
      $region11: #{transformer_decoder_layer.23} parent=5 // pred_region
        %s185 = ssub.s32 %s15, 1
      $region12: #{transformer_decoder_layer.23} parent=5 // pred_fallthru
        _
      %p186 = scmp.lt.s32.totalorder %s15, 8
      // Predicated region
      $region13: #{transformer_decoder_layer.23} parent=5 // pred_check
        %p187 = pneg %p186
      $region14: #{transformer_decoder_layer.23} parent=5 // pred_check_branch
        %189 = sbr.rel (%p187) target = $region16
      $region15: #{transformer_decoder_layer.23} parent=5 // pred_region
        // Predicated region
        $region17: #{transformer_decoder_layer.23} parent=15 // pred_check
          %p190 = pneg %p35
        $region18: #{transformer_decoder_layer.23} parent=15 // pred_check_branch
          %192 = sbr.rel (%p190) target = $region20
        $region19: #{transformer_decoder_layer.23} parent=15 // pred_region
          %p193 = scmp.lt.s32.totalorder %s15, 7
          %s194 = scalar_select %p193, %s15, 7
          %s195 = smul.addr %s194, 8
          %s196 = scalar_lea.vmem %s0, %s195
        $region20: #{transformer_decoder_layer.23} parent=15 // pred_fallthru
          _
        // Predicated region
        $region21: #{transformer_decoder_layer.23} parent=15 // pred_check
          %p197 = pneg %p61
        $region22: #{transformer_decoder_layer.23} parent=15 // pred_check_branch
          %199 = sbr.rel (%p197) target = $region24
        $region23: #{transformer_decoder_layer.23} parent=15 // pred_region
          %p200 = scmp.lt.s32.totalorder %s15, 7
          %s201 = scalar_select %p200, %s15, 7
          %s202 = smul.addr %s201, 2
          %s203 = smul.addr %s202, 8
          %s204 = scalar_lea.vmem %s1, %s203
        $region24: #{transformer_decoder_layer.23} parent=15 // pred_fallthru
          _
        // Predicated region
        $region25: #{transformer_decoder_layer.23} parent=15 // pred_check
          %p205 = pneg %p87
        $region26: #{transformer_decoder_layer.23} parent=15 // pred_check_branch
          %207 = sbr.rel (%p205) target = $region28
        $region27: #{transformer_decoder_layer.23} parent=15 // pred_region
          %p208 = scmp.lt.s32.totalorder %s15, 7
          %s209 = scalar_select %p208, %s15, 7
          %s210 = smul.addr %s209, 2
          %s211 = smul.addr %s210, 8
          %s212 = scalar_lea.vmem %s2, %s211
        $region28: #{transformer_decoder_layer.23} parent=15 // pred_fallthru
          _
        // Predicated region
        $region29: #{transformer_decoder_layer.23} parent=15 // pred_check
          %p213 = pneg %p113
        $region30: #{transformer_decoder_layer.23} parent=15 // pred_check_branch
          %215 = sbr.rel (%p213) target = $region32
        $region31: #{transformer_decoder_layer.23} parent=15 // pred_region
          %p216 = scmp.lt.s32.totalorder %s15, 7
          %s217 = scalar_select %p216, %s15, 7
          %s218 = smul.addr %s217, 8
          %s219 = scalar_lea.vmem %s3, %s218
        $region32: #{transformer_decoder_layer.23} parent=15 // pred_fallthru
          _
      $region16: #{transformer_decoder_layer.23} parent=5 // pred_fallthru
        _
      %p220 = scmp.le.s32.totalorder 1, %s15
      %p221 = scmp.lt.s32.totalorder %s15, 9
      %p222 = pnand %p220, %p221
      %p223 = pneg %p222
      // Predicated region
      $region33: #{transformer_decoder_layer.23} parent=5 // pred_check
        _
      $region34: #{transformer_decoder_layer.23} parent=5 // pred_check_branch
        %225 = sbr.rel (%p222) target = $region36
      $region35: #{transformer_decoder_layer.23} parent=5 // pred_region
        %s226 = ssub.s32 %s15, 1
        %p227 = scmp.lt.s32.totalorder %s20, 7
        %s228 = scalar_select %p227, %s20, 7
        %s229 = smul.addr %s228, 8
        %s230 = scalar_lea.vmem %s0, %s229
        %p231 = pneg %p41
        %p232 = pneg %p38
        %p233 = scmp.lt.s32.totalorder %s20, 7
        %s234 = scalar_select %p233, %s20, 7
        %s235 = smul.addr %s234, 2
        %s236 = smul.addr %s235, 8
        %s237 = scalar_lea.vmem %s1, %s236
        %p238 = pneg %p67
        %p239 = pneg %p64
        %p240 = scmp.lt.s32.totalorder %s20, 7
        %s241 = scalar_select %p240, %s20, 7
        %s242 = smul.addr %s241, 2
        %s243 = smul.addr %s242, 8
        %s244 = scalar_lea.vmem %s2, %s243
        %p245 = pneg %p93
        %p246 = pneg %p90
        %p247 = scmp.lt.s32.totalorder %s20, 7
        %s248 = scalar_select %p247, %s20, 7
        %s249 = smul.addr %s248, 8
        %s250 = scalar_lea.vmem %s3, %s249
        %p251 = pneg %p119
        %p252 = pneg %p116
        %p253 = pneg %p145
        %p254 = pneg %p142
        %p255 = scmp.lt.s32.totalorder %s20, 7
        %s256 = scalar_select %p255, %s20, 7
        %s257 = smul.addr %s256, 8
        %s258 = scalar_lea.vmem %s4, %s257
        %p259 = pneg %p171
        %p260 = pneg %p168
        %s261 = sand.u32 %s158, 1
        %s262 = scalar_lea.sflag [#allocation3], %s261
        %s263 = sand.u32 %s158, 1
        %s264 = smul.addr %s263, 8
        %s265 = scalar_lea.vmem [#allocation2], %s264
        %p266 = scmp.lt.s32.totalorder %s20, 7
        %s267 = scalar_select %p266, %s20, 7
        %s268 = smul.addr %s267, 8
        %s269 = scalar_lea.vmem %s0, %s268
        %p270 = scmp.lt.s32.totalorder %s20, 7
        %s271 = scalar_select %p270, %s20, 7
        %s272 = smul.addr %s271, 2
        %s273 = smul.addr %s272, 8
        %s274 = scalar_lea.vmem %s1, %s273
        %p275 = scmp.lt.s32.totalorder %s20, 7
        %s276 = scalar_select %p275, %s20, 7
        %s277 = smul.addr %s276, 2
        %s278 = smul.addr %s277, 8
        %s279 = scalar_lea.vmem %s2, %s278
        %p280 = scmp.lt.s32.totalorder %s20, 7
        %s281 = scalar_select %p280, %s20, 7
        %s282 = smul.addr %s281, 8
        %s283 = scalar_lea.vmem %s3, %s282
        %p284 = scmp.lt.s32.totalorder %s20, 7
        %s285 = scalar_select %p284, %s20, 7
        %s286 = smul.addr %s285, 8
        %s287 = scalar_lea.vmem %s4, %s286
        %v288 = vld [vmem:[%s269] sm:$0xff]
        %v289 = vld [vmem:[%s274] sm:$0xff]
        %v290 = vld [vmem:[%s274 + $0x8] sm:$0xff]
        %v291 = vld [vmem:[%s279] sm:$0xff]
        %v292 = vld [vmem:[%s279 + $0x8] sm:$0xff]
        %v293 = vld [vmem:[%s283] sm:$0xff]
        %vm294 = vcmask 64512
        %v296 = vsel %vm294, %v288, 0
        %v299 = vsel %vm294, %v289, 0
        %v302 = vsel %vm294, %v290, 0
        %304 = vmatprep.subr.mxu0 0.0
        %305 = vmatpush1.xpose.msra.mxu0 %v299
        %306 = vmatprep.subr.mxu0 0.0
        %307 = vmatpush1.xpose.msra.mxu0 %v302
        %308 = vmatprep.subr.mxu0 0.0
        %309 = vmatpush1.xpose.msra.mxu0 0.0
        %310 = vmatprep.subr.mxu0 0.0
        %311 = vmatpush1.xpose.msra.mxu0 0.0
        %312 = vmatprep.subr.mxu0 0.0
        %313 = vmatpush1.xpose.msra.mxu0 0.0
        %314 = vmatprep.subr.mxu0 0.0
        %315 = vmatpush1.xpose.msra.mxu0 0.0
        %316 = vmatprep.subr.mxu0 0.0
        %317 = vmatpush1.xpose.msra.mxu0 0.0
        %318 = vmatprep.subr.mxu0 0.0
        %319 = vmatpush1.xpose.msra.mxu0 0.0
        %320 = vmatprep.subr.mxu0 0.0
        %321 = vmatpush1.xpose.msra.mxu0 0.0
        %322 = vmatprep.subr.mxu0 0.0
        %323 = vmatpush1.xpose.msra.mxu0 0.0
        %324 = vmatprep.subr.mxu0 0.0
        %325 = vmatpush1.xpose.msra.mxu0 0.0
        %326 = vmatprep.subr.mxu0 0.0
        %327 = vmatpush1.xpose.msra.mxu0 0.0
        %328 = vmatprep.subr.mxu0 0.0
        %329 = vmatpush1.xpose.msra.mxu0 0.0
        %330 = vmatprep.subr.mxu0 0.0
        %331 = vmatpush1.xpose.msra.mxu0 0.0
        %332 = vmatprep.subr.mxu0 0.0
        %333 = vmatpush1.xpose.msra.mxu0 0.0
        %334 = vmatprep.subr.mxu0 0.0
        %335 = vmatpush1.xpose.msra.mxu0 0.0
        %336 = vmatprep.subr.mxu0 0.0
        %337 = vmatpush1.xpose.msra.mxu0 0.0
        %338 = vmatprep.subr.mxu0 0.0
        %339 = vmatpush1.xpose.msra.mxu0 0.0
        %340 = vmatprep.subr.mxu0 0.0
        %341 = vmatpush1.xpose.msra.mxu0 0.0
        %342 = vmatprep.subr.mxu0 0.0
        %343 = vmatpush1.xpose.msra.mxu0 0.0
        %344 = vmatprep.subr.mxu0 0.0
        %345 = vmatpush1.xpose.msra.mxu0 0.0
        %346 = vmatprep.subr.mxu0 0.0
        %347 = vmatpush1.xpose.msra.mxu0 0.0
        %348 = vmatprep.subr.mxu0 0.0
        %349 = vmatpush1.xpose.msra.mxu0 0.0
        %350 = vmatprep.subr.mxu0 0.0
        %351 = vmatpush1.xpose.msra.mxu0 0.0
        %352 = vmatprep.subr.mxu0 0.0
        %353 = vmatpush1.xpose.msra.mxu0 0.0
        %354 = vmatprep.subr.mxu0 0.0
        %355 = vmatpush1.xpose.msra.mxu0 0.0
        %356 = vmatprep.subr.mxu0 0.0
        %357 = vmatpush1.xpose.msra.mxu0 0.0
        %358 = vmatprep.subr.mxu0 0.0
        %359 = vmatpush1.xpose.msra.mxu0 0.0
        %360 = vmatprep.subr.mxu0 0.0
        %361 = vmatpush1.xpose.msra.mxu0 0.0
        %362 = vmatprep.subr.mxu0 0.0
        %363 = vmatpush1.xpose.msra.mxu0 0.0
        %364 = vmatprep.subr.mxu0 0.0
        %365 = vmatpush1.xpose.msra.mxu0 0.0
        %366 = vmatprep.subr.mxu0 0.0
        %367 = vmatpush1.xpose.msra.mxu0 0.0
        %368 = vmatprep.mubr.f32.mxu0 0.0
        %369 = vmatmul.mubr.f32.gmra.mrb[0].mxu0 %v296
        %v370 = vpop.f32.mrb[0].mxu0
        %v371 = vadd.f32 0.0, %v370
        %v372 = vpop.f32.mrb[0].mxu0
        %373 = vdwg.mxu0
        %v374 = vmul.f32 %v371, 0.35355338
        %vm375 = vcmp.eq.f32.partialorder %v293, 0.0
        %v376 = vsel %vm375, -1e+10, %v374
        %vm377 = vcmask 130048
        %v378 = vsel %vm377, %v376, -inf
        %379 = vmax.xlane.f32.xlu0 %v378
        %v380 = vpop.xlane.xlu0 %379
        %v381 = vsub.f32 %v376, %v380
        %v382 = vmul.f32 %v381, 1.442695
        %v383 = vpow.pop %v382
        %v384 = vsel %vm377, %v383, 0.0
        %385 = vadd.xlane.f32.xlu0 %v384
        %v386 = vpop.xlane.xlu0 %385
        %v387 = vrcp.pop %v386
        %v388 = vmul.f32 %v383, %v387
        %v390 = vsel %vm377, %v388, 0
        %392 = vmatprep.subr.mxu0 0.0
        %393 = vmatpush1.msra.mxu0 %v291
        %394 = vmatprep.subr.mxu0 0.0
        %395 = vmatpush1.msra.mxu0 %v292
        %396 = vmatprep.subr.mxu0 0.0
        %397 = vmatpush1.msra.mxu0 0.0
        %398 = vmatprep.subr.mxu0 0.0
        %399 = vmatpush1.msra.mxu0 0.0
        %400 = vmatprep.subr.mxu0 0.0
        %401 = vmatpush1.msra.mxu0 0.0
        %402 = vmatprep.subr.mxu0 0.0
        %403 = vmatpush1.msra.mxu0 0.0
        %404 = vmatprep.subr.mxu0 0.0
        %405 = vmatpush1.msra.mxu0 0.0
        %406 = vmatprep.subr.mxu0 0.0
        %407 = vmatpush1.msra.mxu0 0.0
        %408 = vmatprep.subr.mxu0 0.0
        %409 = vmatpush1.msra.mxu0 0.0
        %410 = vmatprep.subr.mxu0 0.0
        %411 = vmatpush1.msra.mxu0 0.0
        %412 = vmatprep.subr.mxu0 0.0
        %413 = vmatpush1.msra.mxu0 0.0
        %414 = vmatprep.subr.mxu0 0.0
        %415 = vmatpush1.msra.mxu0 0.0
        %416 = vmatprep.subr.mxu0 0.0
        %417 = vmatpush1.msra.mxu0 0.0
        %418 = vmatprep.subr.mxu0 0.0
        %419 = vmatpush1.msra.mxu0 0.0
        %420 = vmatprep.subr.mxu0 0.0
        %421 = vmatpush1.msra.mxu0 0.0
        %422 = vmatprep.subr.mxu0 0.0
        %423 = vmatpush1.msra.mxu0 0.0
        %424 = vmatprep.subr.mxu0 0.0
        %425 = vmatpush1.msra.mxu0 0.0
        %426 = vmatprep.subr.mxu0 0.0
        %427 = vmatpush1.msra.mxu0 0.0
        %428 = vmatprep.subr.mxu0 0.0
        %429 = vmatpush1.msra.mxu0 0.0
        %430 = vmatprep.subr.mxu0 0.0
        %431 = vmatpush1.msra.mxu0 0.0
        %432 = vmatprep.subr.mxu0 0.0
        %433 = vmatpush1.msra.mxu0 0.0
        %434 = vmatprep.subr.mxu0 0.0
        %435 = vmatpush1.msra.mxu0 0.0
        %436 = vmatprep.subr.mxu0 0.0
        %437 = vmatpush1.msra.mxu0 0.0
        %438 = vmatprep.subr.mxu0 0.0
        %439 = vmatpush1.msra.mxu0 0.0
        %440 = vmatprep.subr.mxu0 0.0
        %441 = vmatpush1.msra.mxu0 0.0
        %442 = vmatprep.subr.mxu0 0.0
        %443 = vmatpush1.msra.mxu0 0.0
        %444 = vmatprep.subr.mxu0 0.0
        %445 = vmatpush1.msra.mxu0 0.0
        %446 = vmatprep.subr.mxu0 0.0
        %447 = vmatpush1.msra.mxu0 0.0
        %448 = vmatprep.subr.mxu0 0.0
        %449 = vmatpush1.msra.mxu0 0.0
        %450 = vmatprep.subr.mxu0 0.0
        %451 = vmatpush1.msra.mxu0 0.0
        %452 = vmatprep.subr.mxu0 0.0
        %453 = vmatpush1.msra.mxu0 0.0
        %454 = vmatprep.subr.mxu0 0.0
        %455 = vmatpush1.msra.mxu0 0.0
        %456 = vmatprep.mubr.f32.mxu0 0.0
        %457 = vmatmul.mubr.f32.gmra.mrb[0].mxu0 %v390
        %v458 = vpop.f32.mrb[0].mxu0
        %v459 = vadd.f32 0.0, %v458
        %v460 = vpop.f32.mrb[0].mxu0
        %461 = vdwg.mxu0
        %462 = vst.msk [vmem:[%s287] sm:$0xff] %vm294, %v459
        %463 = vst.msk [vmem:[%s265] sm:$0xff] %vm377, %v388
        %p464 = scmp.lt.s32.totalorder %s20, 7
        %s465 = scalar_select %p464, %s20, 7
        %s466 = smul.addr %s465, 8
        %s467 = scalar_lea.vmem %s4, %s466
        %s468 = sand.u32 %s158, 1
        %s469 = scalar_lea.sflag [#allocation3], %s468
        %s470 = sand.u32 %s158, 1
        %s471 = smul.addr %s470, 8
        %s472 = scalar_lea.vmem [#allocation2], %s471
        // Predicated region
        $region37: #{transformer_decoder_layer.23} parent=35 // pred_check
          %p473 = pneg %p142
        $region38: #{transformer_decoder_layer.23} parent=35 // pred_check_branch
          %475 = sbr.rel (%p473) target = $region40
        $region39: #{transformer_decoder_layer.23} parent=35 // pred_region
          _
        $region40: #{transformer_decoder_layer.23} parent=35 // pred_fallthru
          _
        // Predicated region
        $region41: #{transformer_decoder_layer.23} parent=35 // pred_check
          %p476 = pneg %p168
        $region42: #{transformer_decoder_layer.23} parent=35 // pred_check_branch
          %478 = sbr.rel (%p476) target = $region44
        $region43: #{transformer_decoder_layer.23} parent=35 // pred_region
          %s480 = ssub.s32 128, 128
          %481 = vsyncadd %s469, %s480
          %s482 = smul.addr %s20, 128
          %s483 = scalar_lea.hbm %s5, %s482
          %s485 = sshll.u32 %s472, 4
          %s486 = int_to_ptr.vmem [resolvable:$true] %s485
          %488 = dma.vmem_to_hbm [thread:$0]  %s486, 128, %s483, %s469
        $region44: #{transformer_decoder_layer.23} parent=35 // pred_fallthru
          _
      $region36: #{transformer_decoder_layer.23} parent=5 // pred_fallthru
        _
      %p489 = scmp.le.s32.totalorder 2, %s15
      // Predicated region
      $region45: #{transformer_decoder_layer.23} parent=5 // pred_check
        %p490 = pneg %p489
      $region46: #{transformer_decoder_layer.23} parent=5 // pred_check_branch
        %492 = sbr.rel (%p490) target = $region48
      $region47: #{transformer_decoder_layer.23} parent=5 // pred_region
        %s493 = ssub.s32 %s15, 2
        // Predicated region
        $region49: #{transformer_decoder_layer.23} parent=47 // pred_check
          %p494 = pneg %p148
        $region50: #{transformer_decoder_layer.23} parent=47 // pred_check_branch
          %496 = sbr.rel (%p494) target = $region52
        $region51: #{transformer_decoder_layer.23} parent=47 // pred_region
          %p497 = scmp.lt.s32.totalorder %s21, 7
          %s498 = scalar_select %p497, %s21, 7
          %s499 = smul.addr %s498, 8
          %s500 = scalar_lea.vmem %s4, %s499
        $region52: #{transformer_decoder_layer.23} parent=47 // pred_fallthru
          _
        // Predicated region
        $region53: #{transformer_decoder_layer.23} parent=47 // pred_check
          %p501 = pneg %p174
        $region54: #{transformer_decoder_layer.23} parent=47 // pred_check_branch
          %503 = sbr.rel (%p501) target = $region56
        $region55: #{transformer_decoder_layer.23} parent=47 // pred_region
          %s504 = sand.u32 %s159, 1
          %s505 = scalar_lea.sflag [#allocation3], %s504
          %s506 = sand.u32 %s159, 1
          %s507 = smul.addr %s506, 8
          %s508 = scalar_lea.vmem [#allocation2], %s507
          %509 = dma.done %s505, 128
        $region56: #{transformer_decoder_layer.23} parent=47 // pred_fallthru
          _
      $region48: #{transformer_decoder_layer.23} parent=5 // pred_fallthru
        _
    $region6: #{transformer_decoder_layer.23} parent=1 // loop_footer
      %s19 = sadd.s32 1, %s15
    $region7: #{transformer_decoder_layer.23} parent=1 // loop_footer_branch
      %14 = sbr.rel target = $region3
    $region8: #{transformer_decoder_layer.23} parent=1 // loop_exit
      _
    %510 = vsyncpa [#allocation3], 1
    %s511 = scalar_lea.sflag [#allocation3], 1
    %512 = vsyncpa %s511, 1

</llo_original>
